<compile_context>
chip_gen: v7x
topology: tpu7x:2x2x1
jax: 0.10.0
libtpu: 0.0.40
codegen_flags: <defaults>
</compile_context>

<pallas_src>
import numpy as np
import jax
import jax.numpy as jnp
from jax.experimental import pallas as pl
from jax.experimental.pallas import tpu as pltpu


# ----------------------------- in-kernel helpers -----------------------------

def _leaky_relu(x, slope=0.1):
    # Spec uses F.leaky_relu(..., negative_slope=0.1).
    return jnp.where(x >= 0, x, slope * x)


def _conv_time_fused(h, w_stacked, b, K, pad, bt):
    """Conv1d along the time axis as ONE MXU GEMM.

    h:         (L*bt, Cin), row = l*bt + i (time-major interleave).
    w_stacked: (K*Cin, Cout), row = k*Cin + c   (pre-stacked in the wrapper).
    b:         (1, Cout).
    out[l*bt+i, o] = sum_{k,c} w[k,c,o] * h[(l+k-pad)*bt + i, c]   (zero padded)
    """
    rows, cin = h.shape
    # Zero-haloed staging value, written once per layer (single sublane concat).
    parts = []
    if pad > 0:
        parts.append(jnp.zeros((pad * bt, cin), h.dtype))
    parts.append(h)
    tail = K - 1 - pad
    if tail > 0:
        parts.append(jnp.zeros((tail * bt, cin), h.dtype))
    halo = jnp.concatenate(parts, axis=0) if len(parts) > 1 else h
    # K static bt-aligned sublane slices, fused along lanes -> one wide GEMM.
    wide = jnp.concatenate([halo[k * bt:k * bt + rows, :] for k in range(K)],
                           axis=-1)
    return jnp.dot(wide, w_stacked, preferred_element_type=jnp.float32) + b


def _maxpool_time(h, bt, L):
    """MaxPool1d(kernel_size=2, stride=2) along time: one fused pairwise max."""
    rows, c = h.shape
    L2 = L // 2
    hp = h[:L2 * 2 * bt, :].reshape(L2, 2 * bt, c)        # tile-aligned split
    return jnp.maximum(hp[:, :bt, :], hp[:, bt:, :]).reshape(L2 * bt, c)


def _const_index_map(nd):
    return lambda n: (0,) * nd


# --------------------------------- wrapper ------------------------------------

def classification_autoencoder(x_ncl, params, block_batch=None):
    """x_ncl: (N, C_in, L) float32, PyTorch Conv1d layout. Returns (N, num_classes)."""
    (w1, b1, w2, b2, w3, b3, wf1, bf1, wf2, bf2, wc1, bc1, wc2, bc2) = params
    N, Cin, L0 = x_ncl.shape
    num_classes = wc2.shape[0]
    L2 = L0 // 2                      # length after conv1(same) + maxpool(2,2)
    L5 = L2 - 1                       # length after conv3 (k=2, pad=0)
    F = 32 * L5                       # flattened_size
    H1 = wf1.shape[0]
    assert wf1.shape[1] == F, "fc1 weight does not match input_length bookkeeping"

    NC_pad = -(-num_classes // 128) * 128          # lane-dense output store

    # ---- parameter layouts (glue, done once outside the kernel) ----
    # Conv weights pre-stacked for the fused-tap GEMM: row index = k*Cin + c.
    k_w1 = jnp.transpose(w1, (2, 1, 0)).reshape(3 * Cin, 32).astype(jnp.float32)
    k_w2 = jnp.transpose(w2, (2, 1, 0)).reshape(3 * 32, 64).astype(jnp.float32)
    k_w3 = jnp.transpose(w3, (2, 1, 0)).reshape(2 * 64, 32).astype(jnp.float32)
    # fc1: PyTorch flat index is c*L5 + l ; kernel lane index is l*32 + c.
    k_wf1 = jnp.transpose(wf1.reshape(H1, 32, L5), (2, 1, 0)) \
               .reshape(L5 * 32, H1).astype(jnp.float32)       # (L5*32, H1)
    k_wf2 = wf2.T.astype(jnp.float32)                          # (H1, latent)
    k_wc1 = wc1.T.astype(jnp.float32)                          # (latent, 4)
    k_wc2 = jnp.pad(wc2.T, ((0, 0), (0, NC_pad - num_classes))).astype(jnp.float32)
    k_b1 = b1[None].astype(jnp.float32)
    k_b2 = b2[None].astype(jnp.float32)
    k_b3 = b3[None].astype(jnp.float32)
    k_bf1 = bf1[None].astype(jnp.float32)
    k_bf2 = bf2[None].astype(jnp.float32)
    k_bc1 = bc1[None].astype(jnp.float32)
    k_bc2 = jnp.pad(bc2, (0, NC_pad - num_classes))[None].astype(jnp.float32)

    kernel_params = (k_w1, k_b1, k_w2, k_b2, k_w3, k_b3,
                     k_wf1, k_bf1, k_wf2, k_bf2,
                     k_wc1, k_bc1, k_wc2, k_bc2)

    # ---- batch block (bt) selection ----
    dtype_bytes = 4
    # Rough per-sample activation footprint in f32 (x, halos, widened tap
    # tiles, conv/pool outputs, flatten + fc activations), with slack.
    per_sample_bytes = dtype_bytes * (
        L0 * (7 * Cin + 2 * 32)
        + L2 * (3 * 32 + 96 + 3 * 64 + 128 + 2 * 32)
        + 2 * F + 2 * H1 + 2 * NC_pad)
    if block_batch is None:
        n8 = -(-N // 8) * 8
        act_budget = 20 << 20                       # keep activations well under scoped VMEM
        bt_cap = max(8, (act_budget // per_sample_bytes) // 8 * 8)
        bt = int(min(256, n8, bt_cap))              # target a full MXU of rows
        if bt == n8 and N > 8:
            # keep >=2 grid steps so v7x's two TensorCores both get work
            bt = max(8, -(-((N + 1) // 2) // 8) * 8)
    else:
        bt = block_batch
    assert bt % 8 == 0
    nb = -(-N // bt)
    N_pad = nb * bt

    # Explicit scoped-VMEM request from the computed buffer sizes.
    weight_bytes = sum(int(np.prod(p.shape)) for p in kernel_params) * dtype_bytes
    est_bytes = (2 * weight_bytes                          # double-buffered params
                 + 2 * L0 * bt * Cin * dtype_bytes         # double-buffered x block
                 + 2 * bt * NC_pad * dtype_bytes           # double-buffered out block
                 + 2 * bt * per_sample_bytes)              # in-flight activations
    vmem_limit = int(min(max(est_bytes, 32 << 20), 48 << 20))

    # ---- input layout: (L0, N_pad, Cin).  The (L0, bt, Cin) block per grid
    # step already has row order l*bt + i after a tile-aligned reshape, so no
    # separate interleave relayout pass is needed.
    x_lnc = jnp.transpose(x_ncl, (2, 0, 1)).astype(jnp.float32)   # (L0, N, Cin)
    x_lnc = jnp.pad(x_lnc, ((0, 0), (0, N_pad - N), (0, 0)))

    # ------------------------------- kernel -----------------------------------
    def kernel(x_ref, w1_ref, b1_ref, w2_ref, b2_ref, w3_ref, b3_ref,
               wf1_ref, bf1_ref, wf2_ref, bf2_ref,
               wc1_ref, bc1_ref, wc2_ref, bc2_ref, out_ref):
        # (L0, bt, Cin) -> (L0*bt, Cin); bt % 8 == 0 keeps this tile-aligned.
        h = x_ref[...].reshape(L0 * bt, Cin)

        h = _leaky_relu(_conv_time_fused(h, w1_ref[...], b1_ref[...], 3, 1, bt))
        h = _maxpool_time(h, bt, L0)                               # (L2*bt, 32)
        h = _leaky_relu(_conv_time_fused(h, w2_ref[...], b2_ref[...], 3, 1, bt))
        h = _leaky_relu(_conv_time_fused(h, w3_ref[...], b3_ref[...], 2, 0, bt))

        # encoder_dropout: identity (eval mode).
        # Flatten only the L5 valid time steps into lanes: (bt, L5*32),
        # lane index = l*32 + c, matching the pre-permuted wf1.
        h_flat = jnp.concatenate(
            [h[l * bt:(l + 1) * bt, :] for l in range(L5)], axis=-1)

        z = jnp.dot(h_flat, wf1_ref[...],
                    preferred_element_type=jnp.float32) + bf1_ref[...]
        z = pl.reciprocal(1.0 + jnp.exp(-z))                       # exact sigmoid
        # encoder_dropout: identity (eval mode).
        latent = jnp.dot(z, wf2_ref[...],
                         preferred_element_type=jnp.float32) + bf2_ref[...]

        # classification head (output lanes padded to NC_pad for a dense store)
        c = jnp.maximum(jnp.dot(latent, wc1_ref[...],
                                preferred_element_type=jnp.float32) + bc1_ref[...],
                        0.0)
        out_ref[...] = jnp.dot(c, wc2_ref[...],
                               preferred_element_type=jnp.float32) + bc2_ref[...]

    in_specs = [pl.BlockSpec((L0, bt, Cin), lambda n: (0, n, 0))]
    in_specs += [pl.BlockSpec(p.shape, _const_index_map(p.ndim))
                 for p in kernel_params]

    out = pl.pallas_call(
        kernel,
        out_shape=jax.ShapeDtypeStruct((N_pad, NC_pad), jnp.float32),
        grid=(nb,),
        in_specs=in_specs,
        out_specs=pl.BlockSpec((bt, NC_pad), lambda n: (n, 0)),
        compiler_params=pltpu.CompilerParams(
            dimension_semantics=("parallel",),
            vmem_limit_bytes=vmem_limit),
    )(x_lnc, *kernel_params)
    return out[:N, :num_classes]


# ------------------------- deterministic parameter init ------------------------

def init_params(key, input_channels, latent_dim, num_classes, flattened_size):
    def uinit(k, shape, fan_in):
        bound = 1.0 / np.sqrt(fan_in)
        return jax.random.uniform(k, shape, jnp.float32, -bound, bound)

    ks = jax.random.split(key, 14)
    F = flattened_size
    w1 = uinit(ks[0], (32, input_channels, 3), input_channels * 3)
    b1 = uinit(ks[1], (32,), input_channels * 3)
    w2 = uinit(ks[2], (64, 32, 3), 32 * 3)
    b2 = uinit(ks[3], (64,), 32 * 3)
    w3 = uinit(ks[4], (32, 64, 2), 64 * 2)
    b3 = uinit(ks[5], (32,), 64 * 2)
    wf1 = uinit(ks[6], (F // 2, F), F)
    bf1 = uinit(ks[7], (F // 2,), F)
    wf2 = uinit(ks[8], (latent_dim, F // 2), F // 2)
    bf2 = uinit(ks[9], (latent_dim,), F // 2)
    wc1 = uinit(ks[10], (4, latent_dim), latent_dim)
    bc1 = uinit(ks[11], (4,), latent_dim)
    wc2 = uinit(ks[12], (num_classes, 4), 4)
    bc2 = uinit(ks[13], (num_classes,), 4)
    return (w1, b1, w2, b2, w3, b3, wf1, bf1, wf2, bf2, wc1, bc1, wc2, bc2)


# -------------------------- plain-JAX reference (check) ------------------------

def reference_forward(x, params):
    (w1, b1, w2, b2, w3, b3, wf1, bf1, wf2, bf2, wc1, bc1, wc2, bc2) = params

    def conv1d(x, w, b, pad):
        N, Ci, L = x.shape
        Co, _, K = w.shape
        xp = jnp.pad(x, ((0, 0), (0, 0), (pad, pad)))
        Lout = L + 2 * pad - K + 1
        out = jnp.zeros((N, Co, Lout), jnp.float32)
        for k in range(K):
            out = out + jnp.einsum('oc,ncl->nol', w[:, :, k], xp[:, :, k:k + Lout])
        return out + b[None, :, None]

    lrelu = lambda v: jnp.where(v >= 0, v, 0.1 * v)
    h = lrelu(conv1d(x, w1, b1, 1))
    Lh = h.shape[2]
    h = jnp.maximum(h[:, :, 0:(Lh // 2) * 2:2], h[:, :, 1:(Lh // 2) * 2:2])
    h = lrelu(conv1d(h, w2, b2, 1))
    h = lrelu(conv1d(h, w3, b3, 0))
    flat = h.reshape(h.shape[0], -1)
    z = jax.nn.sigmoid(flat @ wf1.T + bf1)
    latent = z @ wf2.T + bf2
    c = jax.nn.relu(latent @ wc1.T + bc1)
    return c @ wc2.T + bc2


# ----------------------------------- main --------------------------------------

if __name__ == "__main__":
    batch, input_channels, input_length = 2, 8, 16
    latent_dim, num_classes = 8, 4
    L2 = input_length // 2
    L5 = L2 - 1
    flattened_size = 32 * L5        # matches Encoder.__init__ bookkeeping

    key = jax.random.PRNGKey(0)
    kx, kp = jax.random.split(key)
    x = jax.random.normal(kx, (batch, input_channels, input_length), jnp.float32)
    params = init_params(kp, input_channels, latent_dim, num_classes, flattened_size)

    logits = classification_autoencoder(x, params)
    logits = jax.block_until_ready(logits)

    ref = reference_forward(x, params)
    assert logits.shape == (batch, num_classes)
    np.testing.assert_allclose(np.asarray(logits), np.asarray(ref), rtol=1e-4, atol=1e-4)
    print("KERNEL_OK")
</pallas_src>

<mosaic_0001>
module attributes {stable_mosaic.version = 11 : i64} {
  func.func @kernel(%arg0: i32, %arg1: memref<16x8x8xf32, #tpu.memory_space<vmem>>, %arg2: memref<24x32xf32, #tpu.memory_space<vmem>>, %arg3: memref<1x32xf32, #tpu.memory_space<vmem>>, %arg4: memref<96x64xf32, #tpu.memory_space<vmem>>, %arg5: memref<1x64xf32, #tpu.memory_space<vmem>>, %arg6: memref<128x32xf32, #tpu.memory_space<vmem>>, %arg7: memref<1x32xf32, #tpu.memory_space<vmem>>, %arg8: memref<224x112xf32, #tpu.memory_space<vmem>>, %arg9: memref<1x112xf32, #tpu.memory_space<vmem>>, %arg10: memref<112x8xf32, #tpu.memory_space<vmem>>, %arg11: memref<1x8xf32, #tpu.memory_space<vmem>>, %arg12: memref<8x4xf32, #tpu.memory_space<vmem>>, %arg13: memref<1x4xf32, #tpu.memory_space<vmem>>, %arg14: memref<4x128xf32, #tpu.memory_space<vmem>>, %arg15: memref<1x128xf32, #tpu.memory_space<vmem>>, %arg16: memref<8x128xf32, #tpu.memory_space<vmem>>) attributes {dimension_semantics = [#tpu.dimension_semantics<parallel>], iteration_bounds = array<i64: 1>, scalar_prefetch = 0 : i64, scratch_operands = 0 : i64, tpu.core_type = #tpu.core_type<tc>, window_params = [{transform_indices = @transform_0, window_bounds = array<i64: 16, 8, 8>}, {pipeline_mode = #tpu.pipeline_mode<synchronous>, transform_indices = @transform_1, window_bounds = array<i64: 24, 32>}, {pipeline_mode = #tpu.pipeline_mode<synchronous>, transform_indices = @transform_2, window_bounds = array<i64: 1, 32>}, {pipeline_mode = #tpu.pipeline_mode<synchronous>, transform_indices = @transform_3, window_bounds = array<i64: 96, 64>}, {pipeline_mode = #tpu.pipeline_mode<synchronous>, transform_indices = @transform_4, window_bounds = array<i64: 1, 64>}, {pipeline_mode = #tpu.pipeline_mode<synchronous>, transform_indices = @transform_5, window_bounds = array<i64: 128, 32>}, {pipeline_mode = #tpu.pipeline_mode<synchronous>, transform_indices = @transform_6, window_bounds = array<i64: 1, 32>}, {pipeline_mode = #tpu.pipeline_mode<synchronous>, transform_indices = @transform_7, window_bounds = array<i64: 224, 112>}, {pipeline_mode = #tpu.pipeline_mode<synchronous>, transform_indices = @transform_8, window_bounds = array<i64: 1, 112>}, {pipeline_mode = #tpu.pipeline_mode<synchronous>, transform_indices = @transform_9, window_bounds = array<i64: 112, 8>}, {pipeline_mode = #tpu.pipeline_mode<synchronous>, transform_indices = @transform_10, window_bounds = array<i64: 1, 8>}, {pipeline_mode = #tpu.pipeline_mode<synchronous>, transform_indices = @transform_11, window_bounds = array<i64: 8, 4>}, {pipeline_mode = #tpu.pipeline_mode<synchronous>, transform_indices = @transform_12, window_bounds = array<i64: 1, 4>}, {pipeline_mode = #tpu.pipeline_mode<synchronous>, transform_indices = @transform_13, window_bounds = array<i64: 4, 128>}, {pipeline_mode = #tpu.pipeline_mode<synchronous>, transform_indices = @transform_14, window_bounds = array<i64: 1, 128>}, {transform_indices = @transform_15, window_bounds = array<i64: 8, 128>}]} {
    %c0 = arith.constant 0 : index
    %c0_0 = arith.constant 0 : index
    %c0_1 = arith.constant 0 : index
    %0 = vector.load %arg1[%c0, %c0_0, %c0_1] : memref<16x8x8xf32, #tpu.memory_space<vmem>>, vector<16x8x8xf32>
    %1 = vector.shape_cast %0 : vector<16x8x8xf32> to vector<128x8xf32>
    %c0_2 = arith.constant 0 : index
    %c0_3 = arith.constant 0 : index
    %2 = vector.load %arg2[%c0_2, %c0_3] : memref<24x32xf32, #tpu.memory_space<vmem>>, vector<24x32xf32>
    %c0_4 = arith.constant 0 : index
    %c0_5 = arith.constant 0 : index
    %3 = vector.load %arg3[%c0_4, %c0_5] : memref<1x32xf32, #tpu.memory_space<vmem>>, vector<1x32xf32>
    %cst = arith.constant 0.000000e+00 : f32
    %4 = vector.broadcast %cst : f32 to vector<8x8xf32>
    %cst_6 = arith.constant 0.000000e+00 : f32
    %5 = vector.broadcast %cst_6 : f32 to vector<8x8xf32>
    %6 = tpu.concatenate %4, %1, %5 in 0 : vector<8x8xf32>, vector<128x8xf32>, vector<8x8xf32> -> vector<144x8xf32>
    %7 = vector.extract_strided_slice %6 {offsets = [0, 0], sizes = [128, 8], strides = [1, 1]} : vector<144x8xf32> to vector<128x8xf32>
    %8 = vector.extract_strided_slice %6 {offsets = [8, 0], sizes = [128, 8], strides = [1, 1]} : vector<144x8xf32> to vector<128x8xf32>
    %9 = vector.extract_strided_slice %6 {offsets = [16, 0], sizes = [128, 8], strides = [1, 1]} : vector<144x8xf32> to vector<128x8xf32>
    %10 = tpu.concatenate %7, %8, %9 in 1 : vector<128x8xf32>, vector<128x8xf32>, vector<128x8xf32> -> vector<128x24xf32>
    %cst_7 = arith.constant dense<0.000000e+00> : vector<128x32xf32>
    %11 = tpu.matmul %10, %2, %cst_7 {dimension_numbers = #tpu.dot_dimension_numbers<[1], [0], [0], [1], [0, 0, 1, 1], [], []>} : vector<128x24xf32>, vector<24x32xf32>, vector<128x32xf32> -> vector<128x32xf32>
    %12 = vector.broadcast %3 : vector<1x32xf32> to vector<128x32xf32>
    %13 = arith.addf %11, %12 : vector<128x32xf32>
    %cst_8 = arith.constant 0.000000e+00 : f32
    %14 = vector.broadcast %cst_8 : f32 to vector<128x32xf32>
    %15 = arith.cmpf oge, %13, %14 : vector<128x32xf32>
    %cst_9 = arith.constant 1.000000e-01 : f32
    %16 = vector.broadcast %cst_9 : f32 to vector<128x32xf32>
    %17 = arith.mulf %16, %13 : vector<128x32xf32>
    %18 = arith.select %15, %13, %17 : vector<128x32xi1>, vector<128x32xf32>
    %19 = vector.shape_cast %18 : vector<128x32xf32> to vector<8x16x32xf32>
    %20 = vector.extract_strided_slice %19 {offsets = [0, 0, 0], sizes = [8, 8, 32], strides = [1, 1, 1]} : vector<8x16x32xf32> to vector<8x8x32xf32>
    %21 = vector.extract_strided_slice %19 {offsets = [0, 8, 0], sizes = [8, 8, 32], strides = [1, 1, 1]} : vector<8x16x32xf32> to vector<8x8x32xf32>
    %22 = arith.maximumf %20, %21 : vector<8x8x32xf32>
    %23 = vector.shape_cast %22 : vector<8x8x32xf32> to vector<64x32xf32>
    %c0_10 = arith.constant 0 : index
    %c0_11 = arith.constant 0 : index
    %24 = vector.load %arg4[%c0_10, %c0_11] : memref<96x64xf32, #tpu.memory_space<vmem>>, vector<96x64xf32>
    %c0_12 = arith.constant 0 : index
    %c0_13 = arith.constant 0 : index
    %25 = vector.load %arg5[%c0_12, %c0_13] : memref<1x64xf32, #tpu.memory_space<vmem>>, vector<1x64xf32>
    %cst_14 = arith.constant 0.000000e+00 : f32
    %26 = vector.broadcast %cst_14 : f32 to vector<8x32xf32>
    %cst_15 = arith.constant 0.000000e+00 : f32
    %27 = vector.broadcast %cst_15 : f32 to vector<8x32xf32>
    %28 = tpu.concatenate %26, %23, %27 in 0 : vector<8x32xf32>, vector<64x32xf32>, vector<8x32xf32> -> vector<80x32xf32>
    %29 = vector.extract_strided_slice %28 {offsets = [0, 0], sizes = [64, 32], strides = [1, 1]} : vector<80x32xf32> to vector<64x32xf32>
    %30 = vector.extract_strided_slice %28 {offsets = [8, 0], sizes = [64, 32], strides = [1, 1]} : vector<80x32xf32> to vector<64x32xf32>
    %31 = vector.extract_strided_slice %28 {offsets = [16, 0], sizes = [64, 32], strides = [1, 1]} : vector<80x32xf32> to vector<64x32xf32>
    %32 = tpu.concatenate %29, %30, %31 in 1 : vector<64x32xf32>, vector<64x32xf32>, vector<64x32xf32> -> vector<64x96xf32>
    %cst_16 = arith.constant dense<0.000000e+00> : vector<64x64xf32>
    %33 = tpu.matmul %32, %24, %cst_16 {dimension_numbers = #tpu.dot_dimension_numbers<[1], [0], [0], [1], [0, 0, 1, 1], [], []>} : vector<64x96xf32>, vector<96x64xf32>, vector<64x64xf32> -> vector<64x64xf32>
    %34 = vector.broadcast %25 : vector<1x64xf32> to vector<64x64xf32>
    %35 = arith.addf %33, %34 : vector<64x64xf32>
    %cst_17 = arith.constant 0.000000e+00 : f32
    %36 = vector.broadcast %cst_17 : f32 to vector<64x64xf32>
    %37 = arith.cmpf oge, %35, %36 : vector<64x64xf32>
    %cst_18 = arith.constant 1.000000e-01 : f32
    %38 = vector.broadcast %cst_18 : f32 to vector<64x64xf32>
    %39 = arith.mulf %38, %35 : vector<64x64xf32>
    %40 = arith.select %37, %35, %39 : vector<64x64xi1>, vector<64x64xf32>
    %c0_19 = arith.constant 0 : index
    %c0_20 = arith.constant 0 : index
    %41 = vector.load %arg6[%c0_19, %c0_20] : memref<128x32xf32, #tpu.memory_space<vmem>>, vector<128x32xf32>
    %c0_21 = arith.constant 0 : index
    %c0_22 = arith.constant 0 : index
    %42 = vector.load %arg7[%c0_21, %c0_22] : memref<1x32xf32, #tpu.memory_space<vmem>>, vector<1x32xf32>
    %cst_23 = arith.constant 0.000000e+00 : f32
    %43 = vector.broadcast %cst_23 : f32 to vector<8x64xf32>
    %44 = tpu.concatenate %40, %43 in 0 : vector<64x64xf32>, vector<8x64xf32> -> vector<72x64xf32>
    %45 = vector.extract_strided_slice %44 {offsets = [0, 0], sizes = [64, 64], strides = [1, 1]} : vector<72x64xf32> to vector<64x64xf32>
    %46 = vector.extract_strided_slice %44 {offsets = [8, 0], sizes = [64, 64], strides = [1, 1]} : vector<72x64xf32> to vector<64x64xf32>
    %47 = tpu.concatenate %45, %46 in 1 : vector<64x64xf32>, vector<64x64xf32> -> vector<64x128xf32>
    %cst_24 = arith.constant dense<0.000000e+00> : vector<64x32xf32>
    %48 = tpu.matmul %47, %41, %cst_24 {dimension_numbers = #tpu.dot_dimension_numbers<[1], [0], [0], [1], [0, 0, 1, 1], [], []>} : vector<64x128xf32>, vector<128x32xf32>, vector<64x32xf32> -> vector<64x32xf32>
    %49 = vector.broadcast %42 : vector<1x32xf32> to vector<64x32xf32>
    %50 = arith.addf %48, %49 : vector<64x32xf32>
    %cst_25 = arith.constant 0.000000e+00 : f32
    %51 = vector.broadcast %cst_25 : f32 to vector<64x32xf32>
    %52 = arith.cmpf oge, %50, %51 : vector<64x32xf32>
    %cst_26 = arith.constant 1.000000e-01 : f32
    %53 = vector.broadcast %cst_26 : f32 to vector<64x32xf32>
    %54 = arith.mulf %53, %50 : vector<64x32xf32>
    %55 = arith.select %52, %50, %54 : vector<64x32xi1>, vector<64x32xf32>
    %56 = vector.extract_strided_slice %55 {offsets = [0, 0], sizes = [8, 32], strides = [1, 1]} : vector<64x32xf32> to vector<8x32xf32>
    %57 = vector.extract_strided_slice %55 {offsets = [8, 0], sizes = [8, 32], strides = [1, 1]} : vector<64x32xf32> to vector<8x32xf32>
    %58 = vector.extract_strided_slice %55 {offsets = [16, 0], sizes = [8, 32], strides = [1, 1]} : vector<64x32xf32> to vector<8x32xf32>
    %59 = vector.extract_strided_slice %55 {offsets = [24, 0], sizes = [8, 32], strides = [1, 1]} : vector<64x32xf32> to vector<8x32xf32>
    %60 = vector.extract_strided_slice %55 {offsets = [32, 0], sizes = [8, 32], strides = [1, 1]} : vector<64x32xf32> to vector<8x32xf32>
    %61 = vector.extract_strided_slice %55 {offsets = [40, 0], sizes = [8, 32], strides = [1, 1]} : vector<64x32xf32> to vector<8x32xf32>
    %62 = vector.extract_strided_slice %55 {offsets = [48, 0], sizes = [8, 32], strides = [1, 1]} : vector<64x32xf32> to vector<8x32xf32>
    %63 = tpu.concatenate %56, %57, %58, %59, %60, %61, %62 in 1 : vector<8x32xf32>, vector<8x32xf32>, vector<8x32xf32>, vector<8x32xf32>, vector<8x32xf32>, vector<8x32xf32>, vector<8x32xf32> -> vector<8x224xf32>
    %c0_27 = arith.constant 0 : index
    %c0_28 = arith.constant 0 : index
    %64 = vector.load %arg8[%c0_27, %c0_28] : memref<224x112xf32, #tpu.memory_space<vmem>>, vector<224x112xf32>
    %cst_29 = arith.constant dense<0.000000e+00> : vector<8x112xf32>
    %65 = tpu.matmul %63, %64, %cst_29 {dimension_numbers = #tpu.dot_dimension_numbers<[1], [0], [0], [1], [0, 0, 1, 1], [], []>} : vector<8x224xf32>, vector<224x112xf32>, vector<8x112xf32> -> vector<8x112xf32>
    %c0_30 = arith.constant 0 : index
    %c0_31 = arith.constant 0 : index
    %66 = vector.load %arg9[%c0_30, %c0_31] : memref<1x112xf32, #tpu.memory_space<vmem>>, vector<1x112xf32>
    %67 = vector.broadcast %66 : vector<1x112xf32> to vector<8x112xf32>
    %68 = arith.addf %65, %67 : vector<8x112xf32>
    %cst_32 = arith.constant 0.000000e+00 : f32
    %69 = vector.broadcast %cst_32 : f32 to vector<8x112xf32>
    %70 = arith.subf %69, %68 : vector<8x112xf32>
    %71 = math.exp %70 : vector<8x112xf32>
    %cst_33 = arith.constant 1.000000e+00 : f32
    %72 = vector.broadcast %cst_33 : f32 to vector<8x112xf32>
    %73 = arith.addf %72, %71 : vector<8x112xf32>
    %74 = tpu.reciprocal %73 : vector<8x112xf32> -> vector<8x112xf32>
    %c0_34 = arith.constant 0 : index
    %c0_35 = arith.constant 0 : index
    %75 = vector.load %arg10[%c0_34, %c0_35] : memref<112x8xf32, #tpu.memory_space<vmem>>, vector<112x8xf32>
    %cst_36 = arith.constant dense<0.000000e+00> : vector<8x8xf32>
    %76 = tpu.matmul %74, %75, %cst_36 {dimension_numbers = #tpu.dot_dimension_numbers<[1], [0], [0], [1], [0, 0, 1, 1], [], []>} : vector<8x112xf32>, vector<112x8xf32>, vector<8x8xf32> -> vector<8x8xf32>
    %c0_37 = arith.constant 0 : index
    %c0_38 = arith.constant 0 : index
    %77 = vector.load %arg11[%c0_37, %c0_38] : memref<1x8xf32, #tpu.memory_space<vmem>>, vector<1x8xf32>
    %78 = vector.broadcast %77 : vector<1x8xf32> to vector<8x8xf32>
    %79 = arith.addf %76, %78 : vector<8x8xf32>
    %c0_39 = arith.constant 0 : index
    %c0_40 = arith.constant 0 : index
    %80 = vector.load %arg12[%c0_39, %c0_40] : memref<8x4xf32, #tpu.memory_space<vmem>>, vector<8x4xf32>
    %cst_41 = arith.constant dense<0.000000e+00> : vector<8x4xf32>
    %81 = tpu.matmul %79, %80, %cst_41 {dimension_numbers = #tpu.dot_dimension_numbers<[1], [0], [0], [1], [0, 0, 1, 1], [], []>} : vector<8x8xf32>, vector<8x4xf32>, vector<8x4xf32> -> vector<8x4xf32>
    %c0_42 = arith.constant 0 : index
    %c0_43 = arith.constant 0 : index
    %82 = vector.load %arg13[%c0_42, %c0_43] : memref<1x4xf32, #tpu.memory_space<vmem>>, vector<1x4xf32>
    %83 = vector.broadcast %82 : vector<1x4xf32> to vector<8x4xf32>
    %84 = arith.addf %81, %83 : vector<8x4xf32>
    %cst_44 = arith.constant 0.000000e+00 : f32
    %85 = vector.broadcast %cst_44 : f32 to vector<8x4xf32>
    %86 = arith.maximumf %84, %85 : vector<8x4xf32>
    %c0_45 = arith.constant 0 : index
    %c0_46 = arith.constant 0 : index
    %87 = vector.load %arg14[%c0_45, %c0_46] : memref<4x128xf32, #tpu.memory_space<vmem>>, vector<4x128xf32>
    %cst_47 = arith.constant dense<0.000000e+00> : vector<8x128xf32>
    %88 = tpu.matmul %86, %87, %cst_47 {dimension_numbers = #tpu.dot_dimension_numbers<[1], [0], [0], [1], [0, 0, 1, 1], [], []>} : vector<8x4xf32>, vector<4x128xf32>, vector<8x128xf32> -> vector<8x128xf32>
    %c0_48 = arith.constant 0 : index
    %c0_49 = arith.constant 0 : index
    %89 = vector.load %arg15[%c0_48, %c0_49] : memref<1x128xf32, #tpu.memory_space<vmem>>, vector<1x128xf32>
    %90 = vector.broadcast %89 : vector<1x128xf32> to vector<8x128xf32>
    %91 = arith.addf %88, %90 : vector<8x128xf32>
    %c0_50 = arith.constant 0 : index
    %c0_51 = arith.constant 0 : index
    %92 = vector.load %arg16[%c0_50, %c0_51] : memref<8x128xf32, #tpu.memory_space<vmem>>, vector<8x128xf32>
    tpu.vector_store %arg16[%c0_50, %c0_51], %91 {strides = array<i32>} : memref<8x128xf32, #tpu.memory_space<vmem>>, vector<8x128xf32>,
    return
  }
  func.func @transform_0(%arg0: i32) -> (i32, i32, i32) {
    %c0_i32 = arith.constant 0 : i32
    %c0_i32_0 = arith.constant 0 : i32
    %c0_i32_1 = arith.constant 0 : i32
    return %c0_i32, %arg0, %c0_i32_0 : i32, i32, i32
  }
  func.func @transform_1(%arg0: i32) -> (i32, i32) {
    %c0_i32 = arith.constant 0 : i32
    %c0_i32_0 = arith.constant 0 : i32
    %c0_i32_1 = arith.constant 0 : i32
    return %c0_i32, %c0_i32_0 : i32, i32
  }
  func.func @transform_2(%arg0: i32) -> (i32, i32) {
    %c0_i32 = arith.constant 0 : i32
    %c0_i32_0 = arith.constant 0 : i32
    %c0_i32_1 = arith.constant 0 : i32
    return %c0_i32, %c0_i32_0 : i32, i32
  }
  func.func @transform_3(%arg0: i32) -> (i32, i32) {
    %c0_i32 = arith.constant 0 : i32
    %c0_i32_0 = arith.constant 0 : i32
    %c0_i32_1 = arith.constant 0 : i32
    return %c0_i32, %c0_i32_0 : i32, i32
  }
  func.func @transform_4(%arg0: i32) -> (i32, i32) {
    %c0_i32 = arith.constant 0 : i32
    %c0_i32_0 = arith.constant 0 : i32
    %c0_i32_1 = arith.constant 0 : i32
    return %c0_i32, %c0_i32_0 : i32, i32
  }
  func.func @transform_5(%arg0: i32) -> (i32, i32) {
    %c0_i32 = arith.constant 0 : i32
    %c0_i32_0 = arith.constant 0 : i32
    %c0_i32_1 = arith.constant 0 : i32
    return %c0_i32, %c0_i32_0 : i32, i32
  }
  func.func @transform_6(%arg0: i32) -> (i32, i32) {
    %c0_i32 = arith.constant 0 : i32
    %c0_i32_0 = arith.constant 0 : i32
    %c0_i32_1 = arith.constant 0 : i32
    return %c0_i32, %c0_i32_0 : i32, i32
  }
  func.func @transform_7(%arg0: i32) -> (i32, i32) {
    %c0_i32 = arith.constant 0 : i32
    %c0_i32_0 = arith.constant 0 : i32
    %c0_i32_1 = arith.constant 0 : i32
    return %c0_i32, %c0_i32_0 : i32, i32
  }
  func.func @transform_8(%arg0: i32) -> (i32, i32) {
    %c0_i32 = arith.constant 0 : i32
    %c0_i32_0 = arith.constant 0 : i32
    %c0_i32_1 = arith.constant 0 : i32
    return %c0_i32, %c0_i32_0 : i32, i32
  }
  func.func @transform_9(%arg0: i32) -> (i32, i32) {
    %c0_i32 = arith.constant 0 : i32
    %c0_i32_0 = arith.constant 0 : i32
    %c0_i32_1 = arith.constant 0 : i32
    return %c0_i32, %c0_i32_0 : i32, i32
  }
  func.func @transform_10(%arg0: i32) -> (i32, i32) {
    %c0_i32 = arith.constant 0 : i32
    %c0_i32_0 = arith.constant 0 : i32
    %c0_i32_1 = arith.constant 0 : i32
    return %c0_i32, %c0_i32_0 : i32, i32
  }
  func.func @transform_11(%arg0: i32) -> (i32, i32) {
    %c0_i32 = arith.constant 0 : i32
    %c0_i32_0 = arith.constant 0 : i32
    %c0_i32_1 = arith.constant 0 : i32
    return %c0_i32, %c0_i32_0 : i32, i32
  }
  func.func @transform_12(%arg0: i32) -> (i32, i32) {
    %c0_i32 = arith.constant 0 : i32
    %c0_i32_0 = arith.constant 0 : i32
    %c0_i32_1 = arith.constant 0 : i32
    return %c0_i32, %c0_i32_0 : i32, i32
  }
  func.func @transform_13(%arg0: i32) -> (i32, i32) {
    %c0_i32 = arith.constant 0 : i32
    %c0_i32_0 = arith.constant 0 : i32
    %c0_i32_1 = arith.constant 0 : i32
    return %c0_i32, %c0_i32_0 : i32, i32
  }
  func.func @transform_14(%arg0: i32) -> (i32, i32) {
    %c0_i32 = arith.constant 0 : i32
    %c0_i32_0 = arith.constant 0 : i32
    %c0_i32_1 = arith.constant 0 : i32
    return %c0_i32, %c0_i32_0 : i32, i32
  }
  func.func @transform_15(%arg0: i32) -> (i32, i32) {
    %c0_i32 = arith.constant 0 : i32
    %c0_i32_0 = arith.constant 0 : i32
    return %arg0, %c0_i32 : i32, i32
  }
}

</mosaic_0001>

<llo_original>
// kernel: tpu_custom_call.1
$region0: #{tpu_custom_call.1}
  #allocation0 [shape = 'u32[]', space=smem, size = 0x4, offset = 0x4, fixed_abs, tag = 'smem constant byte address 0x4 - core index']
  #allocation1 [shape = 'u32[144,128]{1,0:T(1,128)}', space=vmem, size = 0x12000, scoped, tag = 'internal scratch']
  %s0 = inlined_call_operand.vmem [shape: f32[16,8,8], index: 0, kind: input, shape index: {}]
  %s1 = inlined_call_operand.vmem [shape: f32[24,32], index: 1, kind: input, shape index: {}]
  %s2 = inlined_call_operand.vmem [shape: f32[1,32], index: 2, kind: input, shape index: {}]
  %s3 = inlined_call_operand.vmem [shape: f32[96,64], index: 3, kind: input, shape index: {}]
  %s4 = inlined_call_operand.vmem [shape: f32[1,64], index: 4, kind: input, shape index: {}]
  %s5 = inlined_call_operand.vmem [shape: f32[128,32], index: 5, kind: input, shape index: {}]
  %s6 = inlined_call_operand.vmem [shape: f32[1,32], index: 6, kind: input, shape index: {}]
  %s7 = inlined_call_operand.vmem [shape: f32[224,112], index: 7, kind: input, shape index: {}]
  %s8 = inlined_call_operand.vmem [shape: f32[1,112], index: 8, kind: input, shape index: {}]
  %s9 = inlined_call_operand.vmem [shape: f32[112,8], index: 9, kind: input, shape index: {}]
  %s10 = inlined_call_operand.vmem [shape: f32[1,8], index: 10, kind: input, shape index: {}]
  %s11 = inlined_call_operand.vmem [shape: f32[8,4], index: 11, kind: input, shape index: {}]
  %s12 = inlined_call_operand.vmem [shape: f32[1,4], index: 12, kind: input, shape index: {}]
  %s13 = inlined_call_operand.vmem [shape: f32[4,128], index: 13, kind: input, shape index: {}]
  %s14 = inlined_call_operand.vmem [shape: f32[1,128], index: 14, kind: input, shape index: {}]
  %s15 = inlined_call_operand.hbm [shape: f32[8,128], index: 15, kind: output, shape index: {}]
  %s16 = sld [smem:[#allocation0]]
  $region70: #{tpu_custom_call.1} parent=0
    _
  %s18 = ssub.s32 1, %s16
  %s19 = scalar_select 0, %s18, %s16
  $region1: #{tpu_custom_call.1} parent=0
    #allocation2 [shape = 'u8[4096]{0}', space=vmem, size = 0x1000, scoped, tag = 'output window, operand 0, single buffered']
    #allocation3 [shape = 's32[1]{0}', space=sflag, size = 0x4, scoped, tag = 'scoped memory for tpu_custom_call.1']
    %20 = vsyncpa [#allocation3], 0
    // Predicated region
    $region2: #{tpu_custom_call.1} parent=1 // pred_check
      _
    $region3: #{tpu_custom_call.1} parent=1 // pred_check_branch
      %22 = sbr.rel (0) target = $region5
    $region4: #{tpu_custom_call.1} parent=1 // pred_region
      _
    $region5: #{tpu_custom_call.1} parent=1 // pred_fallthru
      _
    // Predicated region
    $region6: #{tpu_custom_call.1} parent=1 // pred_check
      _
    $region7: #{tpu_custom_call.1} parent=1 // pred_check_branch
      %24 = sbr.rel (0) target = $region9
    $region8: #{tpu_custom_call.1} parent=1 // pred_region
      _
    $region9: #{tpu_custom_call.1} parent=1 // pred_fallthru
      _
    // Predicated region
    $region10: #{tpu_custom_call.1} parent=1 // pred_check
      _
    $region11: #{tpu_custom_call.1} parent=1 // pred_check_branch
      %26 = sbr.rel (0) target = $region13
    $region12: #{tpu_custom_call.1} parent=1 // pred_region
      _
    $region13: #{tpu_custom_call.1} parent=1 // pred_fallthru
      _
    // Predicated region
    $region14: #{tpu_custom_call.1} parent=1 // pred_check
      _
    $region15: #{tpu_custom_call.1} parent=1 // pred_check_branch
      %28 = sbr.rel (0) target = $region17
    $region16: #{tpu_custom_call.1} parent=1 // pred_region
      _
    $region17: #{tpu_custom_call.1} parent=1 // pred_fallthru
      _
    // Predicated region
    $region18: #{tpu_custom_call.1} parent=1 // pred_check
      _
    $region19: #{tpu_custom_call.1} parent=1 // pred_check_branch
      %30 = sbr.rel (0) target = $region21
    $region20: #{tpu_custom_call.1} parent=1 // pred_region
      _
    $region21: #{tpu_custom_call.1} parent=1 // pred_fallthru
      _
    // Predicated region
    $region22: #{tpu_custom_call.1} parent=1 // pred_check
      _
    $region23: #{tpu_custom_call.1} parent=1 // pred_check_branch
      %32 = sbr.rel (0) target = $region25
    $region24: #{tpu_custom_call.1} parent=1 // pred_region
      _
    $region25: #{tpu_custom_call.1} parent=1 // pred_fallthru
      _
    // Predicated region
    $region26: #{tpu_custom_call.1} parent=1 // pred_check
      _
    $region27: #{tpu_custom_call.1} parent=1 // pred_check_branch
      %34 = sbr.rel (0) target = $region29
    $region28: #{tpu_custom_call.1} parent=1 // pred_region
      _
    $region29: #{tpu_custom_call.1} parent=1 // pred_fallthru
      _
    // Predicated region
    $region30: #{tpu_custom_call.1} parent=1 // pred_check
      _
    $region31: #{tpu_custom_call.1} parent=1 // pred_check_branch
      %36 = sbr.rel (0) target = $region33
    $region32: #{tpu_custom_call.1} parent=1 // pred_region
      _
    $region33: #{tpu_custom_call.1} parent=1 // pred_fallthru
      _
    // Predicated region
    $region34: #{tpu_custom_call.1} parent=1 // pred_check
      _
    $region35: #{tpu_custom_call.1} parent=1 // pred_check_branch
      %38 = sbr.rel (0) target = $region37
    $region36: #{tpu_custom_call.1} parent=1 // pred_region
      _
    $region37: #{tpu_custom_call.1} parent=1 // pred_fallthru
      _
    // Predicated region
    $region38: #{tpu_custom_call.1} parent=1 // pred_check
      _
    $region39: #{tpu_custom_call.1} parent=1 // pred_check_branch
      %40 = sbr.rel (0) target = $region41
    $region40: #{tpu_custom_call.1} parent=1 // pred_region
      _
    $region41: #{tpu_custom_call.1} parent=1 // pred_fallthru
      _
    // Predicated region
    $region42: #{tpu_custom_call.1} parent=1 // pred_check
      _
    $region43: #{tpu_custom_call.1} parent=1 // pred_check_branch
      %42 = sbr.rel (0) target = $region45
    $region44: #{tpu_custom_call.1} parent=1 // pred_region
      _
    $region45: #{tpu_custom_call.1} parent=1 // pred_fallthru
      _
    // Predicated region
    $region46: #{tpu_custom_call.1} parent=1 // pred_check
      _
    $region47: #{tpu_custom_call.1} parent=1 // pred_check_branch
      %44 = sbr.rel (0) target = $region49
    $region48: #{tpu_custom_call.1} parent=1 // pred_region
      _
    $region49: #{tpu_custom_call.1} parent=1 // pred_fallthru
      _
    // Predicated region
    $region50: #{tpu_custom_call.1} parent=1 // pred_check
      _
    $region51: #{tpu_custom_call.1} parent=1 // pred_check_branch
      %46 = sbr.rel (0) target = $region53
    $region52: #{tpu_custom_call.1} parent=1 // pred_region
      _
    $region53: #{tpu_custom_call.1} parent=1 // pred_fallthru
      _
    // Predicated region
    $region54: #{tpu_custom_call.1} parent=1 // pred_check
      _
    $region55: #{tpu_custom_call.1} parent=1 // pred_check_branch
      %48 = sbr.rel (0) target = $region57
    $region56: #{tpu_custom_call.1} parent=1 // pred_region
      _
    $region57: #{tpu_custom_call.1} parent=1 // pred_fallthru
      _
    // Predicated region
    $region58: #{tpu_custom_call.1} parent=1 // pred_check
      _
    $region59: #{tpu_custom_call.1} parent=1 // pred_check_branch
      %50 = sbr.rel (0) target = $region61
    $region60: #{tpu_custom_call.1} parent=1 // pred_region
      _
    $region61: #{tpu_custom_call.1} parent=1 // pred_fallthru
      _
    %v51 = vld [vmem:[%s0] sm:$0xff]
    %v52 = vld [vmem:[%s0 + $0x8] sm:$0xff]
    %v53 = vld [vmem:[%s0 + $0x10] sm:$0xff]
    %v54 = vld [vmem:[%s0 + $0x18] sm:$0xff]
    %v55 = vld [vmem:[%s0 + $0x20] sm:$0xff]
    %v56 = vld [vmem:[%s0 + $0x28] sm:$0xff]
    %v57 = vld [vmem:[%s0 + $0x30] sm:$0xff]
    %v58 = vld [vmem:[%s0 + $0x38] sm:$0xff]
    %v59 = vld [vmem:[%s0 + $0x40] sm:$0xff]
    %v60 = vld [vmem:[%s0 + $0x48] sm:$0xff]
    %v61 = vld [vmem:[%s0 + $0x50] sm:$0xff]
    %v62 = vld [vmem:[%s0 + $0x58] sm:$0xff]
    %v63 = vld [vmem:[%s0 + $0x60] sm:$0xff]
    %v64 = vld [vmem:[%s0 + $0x68] sm:$0xff]
    %v65 = vld [vmem:[%s0 + $0x70] sm:$0xff]
    %v66 = vld [vmem:[%s0 + $0x78] sm:$0xff]
    %v67 = vld [vmem:[%s1] sm:$0xff]
    %v68 = vld [vmem:[%s1 + $0x8] sm:$0xff]
    %v69 = vld [vmem:[%s1 + $0x10] sm:$0xff]
    %v70 = vld [vmem:[%s2] sm:$0x1]
    %87 = vrot.lane.b32.xlu0 %v51, 8
    %v88 = vpop.permute.xlu0 %87
    %89 = vrot.lane.b32.xlu0 %v52, 8
    %v90 = vpop.permute.xlu0 %89
    %91 = vrot.lane.b32.xlu0 %v53, 8
    %v92 = vpop.permute.xlu0 %91
    %93 = vrot.lane.b32.xlu0 %v54, 8
    %v94 = vpop.permute.xlu0 %93
    %95 = vrot.lane.b32.xlu0 %v55, 8
    %v96 = vpop.permute.xlu0 %95
    %97 = vrot.lane.b32.xlu0 %v56, 8
    %v98 = vpop.permute.xlu0 %97
    %99 = vrot.lane.b32.xlu0 %v57, 8
    %v100 = vpop.permute.xlu0 %99
    %101 = vrot.lane.b32.xlu0 %v58, 8
    %v102 = vpop.permute.xlu0 %101
    %103 = vrot.lane.b32.xlu0 %v59, 8
    %v104 = vpop.permute.xlu0 %103
    %105 = vrot.lane.b32.xlu0 %v60, 8
    %v106 = vpop.permute.xlu0 %105
    %107 = vrot.lane.b32.xlu0 %v61, 8
    %v108 = vpop.permute.xlu0 %107
    %109 = vrot.lane.b32.xlu0 %v62, 8
    %v110 = vpop.permute.xlu0 %109
    %111 = vrot.lane.b32.xlu0 %v63, 8
    %v112 = vpop.permute.xlu0 %111
    %113 = vrot.lane.b32.xlu0 %v64, 8
    %v114 = vpop.permute.xlu0 %113
    %115 = vrot.lane.b32.xlu0 %v65, 8
    %v116 = vpop.permute.xlu0 %115
    %117 = vrot.lane.b32.xlu0 %v66, 8
    %v118 = vpop.permute.xlu0 %117
    %136 = vrot.lane.b32.xlu0 %v52, 16
    %v137 = vpop.permute.xlu0 %136
    %138 = vrot.lane.b32.xlu0 %v53, 16
    %v139 = vpop.permute.xlu0 %138
    %140 = vrot.lane.b32.xlu0 %v54, 16
    %v141 = vpop.permute.xlu0 %140
    %142 = vrot.lane.b32.xlu0 %v55, 16
    %v143 = vpop.permute.xlu0 %142
    %144 = vrot.lane.b32.xlu0 %v56, 16
    %v145 = vpop.permute.xlu0 %144
    %146 = vrot.lane.b32.xlu0 %v57, 16
    %v147 = vpop.permute.xlu0 %146
    %148 = vrot.lane.b32.xlu0 %v58, 16
    %v149 = vpop.permute.xlu0 %148
    %150 = vrot.lane.b32.xlu0 %v59, 16
    %v151 = vpop.permute.xlu0 %150
    %152 = vrot.lane.b32.xlu0 %v60, 16
    %v153 = vpop.permute.xlu0 %152
    %154 = vrot.lane.b32.xlu0 %v61, 16
    %v155 = vpop.permute.xlu0 %154
    %156 = vrot.lane.b32.xlu0 %v62, 16
    %v157 = vpop.permute.xlu0 %156
    %158 = vrot.lane.b32.xlu0 %v63, 16
    %v159 = vpop.permute.xlu0 %158
    %160 = vrot.lane.b32.xlu0 %v64, 16
    %v161 = vpop.permute.xlu0 %160
    %162 = vrot.lane.b32.xlu0 %v65, 16
    %v163 = vpop.permute.xlu0 %162
    %164 = vrot.lane.b32.xlu0 %v66, 16
    %v165 = vpop.permute.xlu0 %164
    %166 = vrot.lane.b32.xlu0 0.0, 16
    %v167 = vpop.permute.xlu0 %166
    %vm184 = vcmask 64512
    %v185 = vsel %vm184, 0.0, %v88
    %v186 = vsel %vm184, %v51, %v90
    %v187 = vsel %vm184, %v52, %v92
    %v188 = vsel %vm184, %v53, %v94
    %v189 = vsel %vm184, %v54, %v96
    %v190 = vsel %vm184, %v55, %v98
    %v191 = vsel %vm184, %v56, %v100
    %v192 = vsel %vm184, %v57, %v102
    %v193 = vsel %vm184, %v58, %v104
    %v194 = vsel %vm184, %v59, %v106
    %v195 = vsel %vm184, %v60, %v108
    %v196 = vsel %vm184, %v61, %v110
    %v197 = vsel %vm184, %v62, %v112
    %v198 = vsel %vm184, %v63, %v114
    %v199 = vsel %vm184, %v64, %v116
    %v200 = vsel %vm184, %v65, %v118
    %vm201 = vcmask 130048
    %v202 = vsel %vm201, %v185, %v137
    %v203 = vsel %vm201, %v186, %v139
    %v204 = vsel %vm201, %v187, %v141
    %v205 = vsel %vm201, %v188, %v143
    %v206 = vsel %vm201, %v189, %v145
    %v207 = vsel %vm201, %v190, %v147
    %v208 = vsel %vm201, %v191, %v149
    %v209 = vsel %vm201, %v192, %v151
    %v210 = vsel %vm201, %v193, %v153
    %v211 = vsel %vm201, %v194, %v155
    %v212 = vsel %vm201, %v195, %v157
    %v213 = vsel %vm201, %v196, %v159
    %v214 = vsel %vm201, %v197, %v161
    %v215 = vsel %vm201, %v198, %v163
    %v216 = vsel %vm201, %v199, %v165
    %v217 = vsel %vm201, %v200, %v167
    %v219 = vlaneseq
    %v220 = vshrl.u32 %v219, 7
    %v221 = vsub.s32 0, %v220
    %v222 = vrot.slane %v70, %v221
    %vm224 = vcmask 195584
    %v226 = vsel %vm224, %v202, 0
    %v229 = vsel %vm224, %v203, 0
    %v232 = vsel %vm224, %v204, 0
    %v235 = vsel %vm224, %v205, 0
    %v238 = vsel %vm224, %v206, 0
    %v241 = vsel %vm224, %v207, 0
    %v244 = vsel %vm224, %v208, 0
    %v247 = vsel %vm224, %v209, 0
    %v250 = vsel %vm224, %v210, 0
    %v253 = vsel %vm224, %v211, 0
    %v256 = vsel %vm224, %v212, 0
    %v259 = vsel %vm224, %v213, 0
    %v262 = vsel %vm224, %v214, 0
    %v265 = vsel %vm224, %v215, 0
    %v268 = vsel %vm224, %v216, 0
    %v271 = vsel %vm224, %v217, 0
    %273 = vmatprep.subr.mxu0 0.0
    %274 = vmatpush1.msra.mxu0 %v67
    %275 = vmatprep.subr.mxu0 0.0
    %276 = vmatpush1.msra.mxu0 %v68
    %277 = vmatprep.subr.mxu0 0.0
    %278 = vmatpush1.msra.mxu0 %v69
    %279 = vmatprep.subr.mxu0 0.0
    %280 = vmatpush1.msra.mxu0 0.0
    %281 = vmatprep.subr.mxu0 0.0
    %282 = vmatpush1.msra.mxu0 0.0
    %283 = vmatprep.subr.mxu0 0.0
    %284 = vmatpush1.msra.mxu0 0.0
    %285 = vmatprep.subr.mxu0 0.0
    %286 = vmatpush1.msra.mxu0 0.0
    %287 = vmatprep.subr.mxu0 0.0
    %288 = vmatpush1.msra.mxu0 0.0
    %289 = vmatprep.subr.mxu0 0.0
    %290 = vmatpush1.msra.mxu0 0.0
    %291 = vmatprep.subr.mxu0 0.0
    %292 = vmatpush1.msra.mxu0 0.0
    %293 = vmatprep.subr.mxu0 0.0
    %294 = vmatpush1.msra.mxu0 0.0
    %295 = vmatprep.subr.mxu0 0.0
    %296 = vmatpush1.msra.mxu0 0.0
    %297 = vmatprep.subr.mxu0 0.0
    %298 = vmatpush1.msra.mxu0 0.0
    %299 = vmatprep.subr.mxu0 0.0
    %300 = vmatpush1.msra.mxu0 0.0
    %301 = vmatprep.subr.mxu0 0.0
    %302 = vmatpush1.msra.mxu0 0.0
    %303 = vmatprep.subr.mxu0 0.0
    %304 = vmatpush1.msra.mxu0 0.0
    %305 = vmatprep.subr.mxu0 0.0
    %306 = vmatpush1.msra.mxu0 0.0
    %307 = vmatprep.subr.mxu0 0.0
    %308 = vmatpush1.msra.mxu0 0.0
    %309 = vmatprep.subr.mxu0 0.0
    %310 = vmatpush1.msra.mxu0 0.0
    %311 = vmatprep.subr.mxu0 0.0
    %312 = vmatpush1.msra.mxu0 0.0
    %313 = vmatprep.subr.mxu0 0.0
    %314 = vmatpush1.msra.mxu0 0.0
    %315 = vmatprep.subr.mxu0 0.0
    %316 = vmatpush1.msra.mxu0 0.0
    %317 = vmatprep.subr.mxu0 0.0
    %318 = vmatpush1.msra.mxu0 0.0
    %319 = vmatprep.subr.mxu0 0.0
    %320 = vmatpush1.msra.mxu0 0.0
    %321 = vmatprep.subr.mxu0 0.0
    %322 = vmatpush1.msra.mxu0 0.0
    %323 = vmatprep.subr.mxu0 0.0
    %324 = vmatpush1.msra.mxu0 0.0
    %325 = vmatprep.subr.mxu0 0.0
    %326 = vmatpush1.msra.mxu0 0.0
    %327 = vmatprep.subr.mxu0 0.0
    %328 = vmatpush1.msra.mxu0 0.0
    %329 = vmatprep.subr.mxu0 0.0
    %330 = vmatpush1.msra.mxu0 0.0
    %331 = vmatprep.subr.mxu0 0.0
    %332 = vmatpush1.msra.mxu0 0.0
    %333 = vmatprep.subr.mxu0 0.0
    %334 = vmatpush1.msra.mxu0 0.0
    %335 = vmatprep.subr.mxu0 0.0
    %336 = vmatpush1.msra.mxu0 0.0
    %337 = vmatprep.mubr.f32.mxu0 0.0
    %338 = vmatmul.mubr.f32.gmra.mrb[0].mxu0 %v226
    %v339 = vpop.f32.mrb[0].mxu0
    %v340 = vadd.f32 %v222, %v339
    %v341 = vpop.f32.mrb[0].mxu0
    %342 = vmatprep.mubr.f32.mxu0 0.0
    %343 = vmatmul.mubr.f32.gmra.mrb[0].mxu0 %v229
    %v344 = vpop.f32.mrb[0].mxu0
    %v345 = vadd.f32 %v222, %v344
    %v346 = vpop.f32.mrb[0].mxu0
    %347 = vmatprep.mubr.f32.mxu0 0.0
    %348 = vmatmul.mubr.f32.gmra.mrb[0].mxu0 %v232
    %v349 = vpop.f32.mrb[0].mxu0
    %v350 = vadd.f32 %v222, %v349
    %v351 = vpop.f32.mrb[0].mxu0
    %352 = vmatprep.mubr.f32.mxu0 0.0
    %353 = vmatmul.mubr.f32.gmra.mrb[0].mxu0 %v235
    %v354 = vpop.f32.mrb[0].mxu0
    %v355 = vadd.f32 %v222, %v354
    %v356 = vpop.f32.mrb[0].mxu0
    %357 = vmatprep.mubr.f32.mxu0 0.0
    %358 = vmatmul.mubr.f32.gmra.mrb[0].mxu0 %v238
    %v359 = vpop.f32.mrb[0].mxu0
    %v360 = vadd.f32 %v222, %v359
    %v361 = vpop.f32.mrb[0].mxu0
    %362 = vmatprep.mubr.f32.mxu0 0.0
    %363 = vmatmul.mubr.f32.gmra.mrb[0].mxu0 %v241
    %v364 = vpop.f32.mrb[0].mxu0
    %v365 = vadd.f32 %v222, %v364
    %v366 = vpop.f32.mrb[0].mxu0
    %367 = vmatprep.mubr.f32.mxu0 0.0
    %368 = vmatmul.mubr.f32.gmra.mrb[0].mxu0 %v244
    %v369 = vpop.f32.mrb[0].mxu0
    %v370 = vadd.f32 %v222, %v369
    %v371 = vpop.f32.mrb[0].mxu0
    %372 = vmatprep.mubr.f32.mxu0 0.0
    %373 = vmatmul.mubr.f32.gmra.mrb[0].mxu0 %v247
    %v374 = vpop.f32.mrb[0].mxu0
    %v375 = vadd.f32 %v222, %v374
    %v376 = vpop.f32.mrb[0].mxu0
    %377 = vmatprep.mubr.f32.mxu0 0.0
    %378 = vmatmul.mubr.f32.gmra.mrb[0].mxu0 %v250
    %v379 = vpop.f32.mrb[0].mxu0
    %v380 = vadd.f32 %v222, %v379
    %v381 = vpop.f32.mrb[0].mxu0
    %382 = vmatprep.mubr.f32.mxu0 0.0
    %383 = vmatmul.mubr.f32.gmra.mrb[0].mxu0 %v253
    %v384 = vpop.f32.mrb[0].mxu0
    %v385 = vadd.f32 %v222, %v384
    %v386 = vpop.f32.mrb[0].mxu0
    %387 = vmatprep.mubr.f32.mxu0 0.0
    %388 = vmatmul.mubr.f32.gmra.mrb[0].mxu0 %v256
    %v389 = vpop.f32.mrb[0].mxu0
    %v390 = vadd.f32 %v222, %v389
    %v391 = vpop.f32.mrb[0].mxu0
    %392 = vmatprep.mubr.f32.mxu0 0.0
    %393 = vmatmul.mubr.f32.gmra.mrb[0].mxu0 %v259
    %v394 = vpop.f32.mrb[0].mxu0
    %v395 = vadd.f32 %v222, %v394
    %v396 = vpop.f32.mrb[0].mxu0
    %397 = vmatprep.mubr.f32.mxu0 0.0
    %398 = vmatmul.mubr.f32.gmra.mrb[0].mxu0 %v262
    %v399 = vpop.f32.mrb[0].mxu0
    %v400 = vadd.f32 %v222, %v399
    %v401 = vpop.f32.mrb[0].mxu0
    %402 = vmatprep.mubr.f32.mxu0 0.0
    %403 = vmatmul.mubr.f32.gmra.mrb[0].mxu0 %v265
    %v404 = vpop.f32.mrb[0].mxu0
    %v405 = vadd.f32 %v222, %v404
    %v406 = vpop.f32.mrb[0].mxu0
    %407 = vmatprep.mubr.f32.mxu0 0.0
    %408 = vmatmul.mubr.f32.gmra.mrb[0].mxu0 %v268
    %v409 = vpop.f32.mrb[0].mxu0
    %v410 = vadd.f32 %v222, %v409
    %v411 = vpop.f32.mrb[0].mxu0
    %412 = vmatprep.mubr.f32.mxu0 0.0
    %413 = vmatmul.mubr.f32.gmra.mrb[0].mxu0 %v271
    %v414 = vpop.f32.mrb[0].mxu0
    %v415 = vadd.f32 %v222, %v414
    %v416 = vpop.f32.mrb[0].mxu0
    %417 = vdwg.mxu0
    %vm418 = vcmp.ge.f32.partialorder %v340, 0.0
    %vm419 = vcmp.ge.f32.partialorder %v345, 0.0
    %vm420 = vcmp.ge.f32.partialorder %v350, 0.0
    %vm421 = vcmp.ge.f32.partialorder %v355, 0.0
    %vm422 = vcmp.ge.f32.partialorder %v360, 0.0
    %vm423 = vcmp.ge.f32.partialorder %v365, 0.0
    %vm424 = vcmp.ge.f32.partialorder %v370, 0.0
    %vm425 = vcmp.ge.f32.partialorder %v375, 0.0
    %vm426 = vcmp.ge.f32.partialorder %v380, 0.0
    %vm427 = vcmp.ge.f32.partialorder %v385, 0.0
    %vm428 = vcmp.ge.f32.partialorder %v390, 0.0
    %vm429 = vcmp.ge.f32.partialorder %v395, 0.0
    %vm430 = vcmp.ge.f32.partialorder %v400, 0.0
    %vm431 = vcmp.ge.f32.partialorder %v405, 0.0
    %vm432 = vcmp.ge.f32.partialorder %v410, 0.0
    %vm433 = vcmp.ge.f32.partialorder %v415, 0.0
    %v434 = vmul.f32 %v340, 0.1
    %v435 = vmul.f32 %v345, 0.1
    %v436 = vmul.f32 %v350, 0.1
    %v437 = vmul.f32 %v355, 0.1
    %v438 = vmul.f32 %v360, 0.1
    %v439 = vmul.f32 %v365, 0.1
    %v440 = vmul.f32 %v370, 0.1
    %v441 = vmul.f32 %v375, 0.1
    %v442 = vmul.f32 %v380, 0.1
    %v443 = vmul.f32 %v385, 0.1
    %v444 = vmul.f32 %v390, 0.1
    %v445 = vmul.f32 %v395, 0.1
    %v446 = vmul.f32 %v400, 0.1
    %v447 = vmul.f32 %v405, 0.1
    %v448 = vmul.f32 %v410, 0.1
    %v449 = vmul.f32 %v415, 0.1
    %v450 = vsel %vm418, %v340, %v434
    %v451 = vsel %vm419, %v345, %v435
    %v452 = vsel %vm420, %v350, %v436
    %v453 = vsel %vm421, %v355, %v437
    %v454 = vsel %vm422, %v360, %v438
    %v455 = vsel %vm423, %v365, %v439
    %v456 = vsel %vm424, %v370, %v440
    %v457 = vsel %vm425, %v375, %v441
    %v458 = vsel %vm426, %v380, %v442
    %v459 = vsel %vm427, %v385, %v443
    %v460 = vsel %vm428, %v390, %v444
    %v461 = vsel %vm429, %v395, %v445
    %v462 = vsel %vm430, %v400, %v446
    %v463 = vsel %vm431, %v405, %v447
    %v464 = vsel %vm432, %v410, %v448
    %v465 = vsel %vm433, %v415, %v449
    %v466 = vmax.f32 %v450, %v451
    %v467 = vmax.f32 %v452, %v453
    %v468 = vmax.f32 %v454, %v455
    %v469 = vmax.f32 %v456, %v457
    %v470 = vmax.f32 %v458, %v459
    %v471 = vmax.f32 %v460, %v461
    %v472 = vmax.f32 %v462, %v463
    %v473 = vmax.f32 %v464, %v465
    %v474 = vld [vmem:[%s3] sm:$0xff]
    %v475 = vld [vmem:[%s3 + $0x8] sm:$0xff]
    %v476 = vld [vmem:[%s3 + $0x10] sm:$0xff]
    %v477 = vld [vmem:[%s3 + $0x18] sm:$0xff]
    %v478 = vld [vmem:[%s3 + $0x20] sm:$0xff]
    %v479 = vld [vmem:[%s3 + $0x28] sm:$0xff]
    %v480 = vld [vmem:[%s3 + $0x30] sm:$0xff]
    %v481 = vld [vmem:[%s3 + $0x38] sm:$0xff]
    %v482 = vld [vmem:[%s3 + $0x40] sm:$0xff]
    %v483 = vld [vmem:[%s3 + $0x48] sm:$0xff]
    %v484 = vld [vmem:[%s3 + $0x50] sm:$0xff]
    %v485 = vld [vmem:[%s3 + $0x58] sm:$0xff]
    %v486 = vld [vmem:[%s4] sm:$0x1]
    %495 = vrot.lane.b32.xlu0 %v466, 32
    %v496 = vpop.permute.xlu0 %495
    %497 = vrot.lane.b32.xlu0 %v467, 32
    %v498 = vpop.permute.xlu0 %497
    %499 = vrot.lane.b32.xlu0 %v468, 32
    %v500 = vpop.permute.xlu0 %499
    %501 = vrot.lane.b32.xlu0 %v469, 32
    %v502 = vpop.permute.xlu0 %501
    %503 = vrot.lane.b32.xlu0 %v470, 32
    %v504 = vpop.permute.xlu0 %503
    %505 = vrot.lane.b32.xlu0 %v471, 32
    %v506 = vpop.permute.xlu0 %505
    %507 = vrot.lane.b32.xlu0 %v472, 32
    %v508 = vpop.permute.xlu0 %507
    %509 = vrot.lane.b32.xlu0 %v473, 32
    %v510 = vpop.permute.xlu0 %509
    %519 = vrot.lane.b32.xlu0 %v467, 64
    %v520 = vpop.permute.xlu0 %519
    %521 = vrot.lane.b32.xlu0 %v468, 64
    %v522 = vpop.permute.xlu0 %521
    %523 = vrot.lane.b32.xlu0 %v469, 64
    %v524 = vpop.permute.xlu0 %523
    %525 = vrot.lane.b32.xlu0 %v470, 64
    %v526 = vpop.permute.xlu0 %525
    %527 = vrot.lane.b32.xlu0 %v471, 64
    %v528 = vpop.permute.xlu0 %527
    %529 = vrot.lane.b32.xlu0 %v472, 64
    %v530 = vpop.permute.xlu0 %529
    %531 = vrot.lane.b32.xlu0 %v473, 64
    %v532 = vpop.permute.xlu0 %531
    %533 = vrot.lane.b32.xlu0 0.0, 64
    %v534 = vpop.permute.xlu0 %533
    %vm543 = vcmask 261120
    %v544 = vsel %vm543, 0.0, %v496
    %v545 = vsel %vm543, %v466, %v498
    %v546 = vsel %vm543, %v467, %v500
    %v547 = vsel %vm543, %v468, %v502
    %v548 = vsel %vm543, %v469, %v504
    %v549 = vsel %vm543, %v470, %v506
    %v550 = vsel %vm543, %v471, %v508
    %v551 = vsel %vm543, %v472, %v510
    %vm552 = vcmask 523264
    %v553 = vsel %vm552, %v544, %v520
    %v554 = vsel %vm552, %v545, %v522
    %v555 = vsel %vm552, %v546, %v524
    %v556 = vsel %vm552, %v547, %v526
    %v557 = vsel %vm552, %v548, %v528
    %v558 = vsel %vm552, %v549, %v530
    %v559 = vsel %vm552, %v550, %v532
    %v560 = vsel %vm552, %v551, %v534
    %v562 = vlaneseq
    %v563 = vshrl.u32 %v562, 7
    %v564 = vsub.s32 0, %v563
    %v565 = vrot.slane %v486, %v564
    %vm567 = vcmask 785408
    %v569 = vsel %vm567, %v553, 0
    %v572 = vsel %vm567, %v554, 0
    %v575 = vsel %vm567, %v555, 0
    %v578 = vsel %vm567, %v556, 0
    %v581 = vsel %vm567, %v557, 0
    %v584 = vsel %vm567, %v558, 0
    %v587 = vsel %vm567, %v559, 0
    %v590 = vsel %vm567, %v560, 0
    %592 = vmatprep.subr.mxu0 0.0
    %593 = vmatpush1.msra.mxu0 %v474
    %594 = vmatprep.subr.mxu0 0.0
    %595 = vmatpush1.msra.mxu0 %v475
    %596 = vmatprep.subr.mxu0 0.0
    %597 = vmatpush1.msra.mxu0 %v476
    %598 = vmatprep.subr.mxu0 0.0
    %599 = vmatpush1.msra.mxu0 %v477
    %600 = vmatprep.subr.mxu0 0.0
    %601 = vmatpush1.msra.mxu0 %v478
    %602 = vmatprep.subr.mxu0 0.0
    %603 = vmatpush1.msra.mxu0 %v479
    %604 = vmatprep.subr.mxu0 0.0
    %605 = vmatpush1.msra.mxu0 %v480
    %606 = vmatprep.subr.mxu0 0.0
    %607 = vmatpush1.msra.mxu0 %v481
    %608 = vmatprep.subr.mxu0 0.0
    %609 = vmatpush1.msra.mxu0 %v482
    %610 = vmatprep.subr.mxu0 0.0
    %611 = vmatpush1.msra.mxu0 %v483
    %612 = vmatprep.subr.mxu0 0.0
    %613 = vmatpush1.msra.mxu0 %v484
    %614 = vmatprep.subr.mxu0 0.0
    %615 = vmatpush1.msra.mxu0 %v485
    %616 = vmatprep.subr.mxu0 0.0
    %617 = vmatpush1.msra.mxu0 0.0
    %618 = vmatprep.subr.mxu0 0.0
    %619 = vmatpush1.msra.mxu0 0.0
    %620 = vmatprep.subr.mxu0 0.0
    %621 = vmatpush1.msra.mxu0 0.0
    %622 = vmatprep.subr.mxu0 0.0
    %623 = vmatpush1.msra.mxu0 0.0
    %624 = vmatprep.subr.mxu0 0.0
    %625 = vmatpush1.msra.mxu0 0.0
    %626 = vmatprep.subr.mxu0 0.0
    %627 = vmatpush1.msra.mxu0 0.0
    %628 = vmatprep.subr.mxu0 0.0
    %629 = vmatpush1.msra.mxu0 0.0
    %630 = vmatprep.subr.mxu0 0.0
    %631 = vmatpush1.msra.mxu0 0.0
    %632 = vmatprep.subr.mxu0 0.0
    %633 = vmatpush1.msra.mxu0 0.0
    %634 = vmatprep.subr.mxu0 0.0
    %635 = vmatpush1.msra.mxu0 0.0
    %636 = vmatprep.subr.mxu0 0.0
    %637 = vmatpush1.msra.mxu0 0.0
    %638 = vmatprep.subr.mxu0 0.0
    %639 = vmatpush1.msra.mxu0 0.0
    %640 = vmatprep.subr.mxu0 0.0
    %641 = vmatpush1.msra.mxu0 0.0
    %642 = vmatprep.subr.mxu0 0.0
    %643 = vmatpush1.msra.mxu0 0.0
    %644 = vmatprep.subr.mxu0 0.0
    %645 = vmatpush1.msra.mxu0 0.0
    %646 = vmatprep.subr.mxu0 0.0
    %647 = vmatpush1.msra.mxu0 0.0
    %648 = vmatprep.subr.mxu0 0.0
    %649 = vmatpush1.msra.mxu0 0.0
    %650 = vmatprep.subr.mxu0 0.0
    %651 = vmatpush1.msra.mxu0 0.0
    %652 = vmatprep.subr.mxu0 0.0
    %653 = vmatpush1.msra.mxu0 0.0
    %654 = vmatprep.subr.mxu0 0.0
    %655 = vmatpush1.msra.mxu0 0.0
    %656 = vmatprep.mubr.f32.mxu0 0.0
    %657 = vmatmul.mubr.f32.gmra.mrb[0].mxu0 %v569
    %v658 = vpop.f32.mrb[0].mxu0
    %v659 = vadd.f32 %v565, %v658
    %v660 = vpop.f32.mrb[0].mxu0
    %661 = vmatprep.mubr.f32.mxu0 0.0
    %662 = vmatmul.mubr.f32.gmra.mrb[0].mxu0 %v572
    %v663 = vpop.f32.mrb[0].mxu0
    %v664 = vadd.f32 %v565, %v663
    %v665 = vpop.f32.mrb[0].mxu0
    %666 = vmatprep.mubr.f32.mxu0 0.0
    %667 = vmatmul.mubr.f32.gmra.mrb[0].mxu0 %v575
    %v668 = vpop.f32.mrb[0].mxu0
    %v669 = vadd.f32 %v565, %v668
    %v670 = vpop.f32.mrb[0].mxu0
    %671 = vmatprep.mubr.f32.mxu0 0.0
    %672 = vmatmul.mubr.f32.gmra.mrb[0].mxu0 %v578
    %v673 = vpop.f32.mrb[0].mxu0
    %v674 = vadd.f32 %v565, %v673
    %v675 = vpop.f32.mrb[0].mxu0
    %676 = vmatprep.mubr.f32.mxu0 0.0
    %677 = vmatmul.mubr.f32.gmra.mrb[0].mxu0 %v581
    %v678 = vpop.f32.mrb[0].mxu0
    %v679 = vadd.f32 %v565, %v678
    %v680 = vpop.f32.mrb[0].mxu0
    %681 = vmatprep.mubr.f32.mxu0 0.0
    %682 = vmatmul.mubr.f32.gmra.mrb[0].mxu0 %v584
    %v683 = vpop.f32.mrb[0].mxu0
    %v684 = vadd.f32 %v565, %v683
    %v685 = vpop.f32.mrb[0].mxu0
    %686 = vmatprep.mubr.f32.mxu0 0.0
    %687 = vmatmul.mubr.f32.gmra.mrb[0].mxu0 %v587
    %v688 = vpop.f32.mrb[0].mxu0
    %v689 = vadd.f32 %v565, %v688
    %v690 = vpop.f32.mrb[0].mxu0
    %691 = vmatprep.mubr.f32.mxu0 0.0
    %692 = vmatmul.mubr.f32.gmra.mrb[0].mxu0 %v590
    %v693 = vpop.f32.mrb[0].mxu0
    %v694 = vadd.f32 %v565, %v693
    %v695 = vpop.f32.mrb[0].mxu0
    %696 = vdwg.mxu0
    %vm697 = vcmp.ge.f32.partialorder %v659, 0.0
    %vm698 = vcmp.ge.f32.partialorder %v664, 0.0
    %vm699 = vcmp.ge.f32.partialorder %v669, 0.0
    %vm700 = vcmp.ge.f32.partialorder %v674, 0.0
    %vm701 = vcmp.ge.f32.partialorder %v679, 0.0
    %vm702 = vcmp.ge.f32.partialorder %v684, 0.0
    %vm703 = vcmp.ge.f32.partialorder %v689, 0.0
    %vm704 = vcmp.ge.f32.partialorder %v694, 0.0
    %v705 = vmul.f32 %v659, 0.1
    %v706 = vmul.f32 %v664, 0.1
    %v707 = vmul.f32 %v669, 0.1
    %v708 = vmul.f32 %v674, 0.1
    %v709 = vmul.f32 %v679, 0.1
    %v710 = vmul.f32 %v684, 0.1
    %v711 = vmul.f32 %v689, 0.1
    %v712 = vmul.f32 %v694, 0.1
    %v713 = vsel %vm697, %v659, %v705
    %v714 = vsel %vm698, %v664, %v706
    %v715 = vsel %vm699, %v669, %v707
    %v716 = vsel %vm700, %v674, %v708
    %v717 = vsel %vm701, %v679, %v709
    %v718 = vsel %vm702, %v684, %v710
    %v719 = vsel %vm703, %v689, %v711
    %v720 = vsel %vm704, %v694, %v712
    %v721 = vld [vmem:[%s5] sm:$0xff]
    %v722 = vld [vmem:[%s5 + $0x8] sm:$0xff]
    %v723 = vld [vmem:[%s5 + $0x10] sm:$0xff]
    %v724 = vld [vmem:[%s5 + $0x18] sm:$0xff]
    %v725 = vld [vmem:[%s5 + $0x20] sm:$0xff]
    %v726 = vld [vmem:[%s5 + $0x28] sm:$0xff]
    %v727 = vld [vmem:[%s5 + $0x30] sm:$0xff]
    %v728 = vld [vmem:[%s5 + $0x38] sm:$0xff]
    %v729 = vld [vmem:[%s5 + $0x40] sm:$0xff]
    %v730 = vld [vmem:[%s5 + $0x48] sm:$0xff]
    %v731 = vld [vmem:[%s5 + $0x50] sm:$0xff]
    %v732 = vld [vmem:[%s5 + $0x58] sm:$0xff]
    %v733 = vld [vmem:[%s5 + $0x60] sm:$0xff]
    %v734 = vld [vmem:[%s5 + $0x68] sm:$0xff]
    %v735 = vld [vmem:[%s5 + $0x70] sm:$0xff]
    %v736 = vld [vmem:[%s5 + $0x78] sm:$0xff]
    %v737 = vld [vmem:[%s6] sm:$0x1]
    %745 = vrot.lane.b32.xlu0 %v714, 64
    %v746 = vpop.permute.xlu0 %745
    %747 = vrot.lane.b32.xlu0 %v715, 64
    %v748 = vpop.permute.xlu0 %747
    %749 = vrot.lane.b32.xlu0 %v716, 64
    %v750 = vpop.permute.xlu0 %749
    %751 = vrot.lane.b32.xlu0 %v717, 64
    %v752 = vpop.permute.xlu0 %751
    %753 = vrot.lane.b32.xlu0 %v718, 64
    %v754 = vpop.permute.xlu0 %753
    %755 = vrot.lane.b32.xlu0 %v719, 64
    %v756 = vpop.permute.xlu0 %755
    %757 = vrot.lane.b32.xlu0 %v720, 64
    %v758 = vpop.permute.xlu0 %757
    %v766 = vsel %vm552, %v713, %v746
    %v767 = vsel %vm552, %v714, %v748
    %v768 = vsel %vm552, %v715, %v750
    %v769 = vsel %vm552, %v716, %v752
    %v770 = vsel %vm552, %v717, %v754
    %v771 = vsel %vm552, %v718, %v756
    %v772 = vsel %vm552, %v719, %v758
    %v773 = vsel %vm552, %v720, %v534
    %v775 = vlaneseq
    %v776 = vshrl.u32 %v775, 7
    %v777 = vsub.s32 0, %v776
    %v778 = vrot.slane %v737, %v777
    %780 = vmatprep.subr.mxu0 0.0
    %781 = vmatpush1.msra.mxu0 %v721
    %782 = vmatprep.subr.mxu0 0.0
    %783 = vmatpush1.msra.mxu0 %v722
    %784 = vmatprep.subr.mxu0 0.0
    %785 = vmatpush1.msra.mxu0 %v723
    %786 = vmatprep.subr.mxu0 0.0
    %787 = vmatpush1.msra.mxu0 %v724
    %788 = vmatprep.subr.mxu0 0.0
    %789 = vmatpush1.msra.mxu0 %v725
    %790 = vmatprep.subr.mxu0 0.0
    %791 = vmatpush1.msra.mxu0 %v726
    %792 = vmatprep.subr.mxu0 0.0
    %793 = vmatpush1.msra.mxu0 %v727
    %794 = vmatprep.subr.mxu0 0.0
    %795 = vmatpush1.msra.mxu0 %v728
    %796 = vmatprep.subr.mxu0 0.0
    %797 = vmatpush1.msra.mxu0 %v729
    %798 = vmatprep.subr.mxu0 0.0
    %799 = vmatpush1.msra.mxu0 %v730
    %800 = vmatprep.subr.mxu0 0.0
    %801 = vmatpush1.msra.mxu0 %v731
    %802 = vmatprep.subr.mxu0 0.0
    %803 = vmatpush1.msra.mxu0 %v732
    %804 = vmatprep.subr.mxu0 0.0
    %805 = vmatpush1.msra.mxu0 %v733
    %806 = vmatprep.subr.mxu0 0.0
    %807 = vmatpush1.msra.mxu0 %v734
    %808 = vmatprep.subr.mxu0 0.0
    %809 = vmatpush1.msra.mxu0 %v735
    %810 = vmatprep.subr.mxu0 0.0
    %811 = vmatpush1.msra.mxu0 %v736
    %812 = vmatprep.subr.mxu0 0.0
    %813 = vmatpush1.msra.mxu0 0.0
    %814 = vmatprep.subr.mxu0 0.0
    %815 = vmatpush1.msra.mxu0 0.0
    %816 = vmatprep.subr.mxu0 0.0
    %817 = vmatpush1.msra.mxu0 0.0
    %818 = vmatprep.subr.mxu0 0.0
    %819 = vmatpush1.msra.mxu0 0.0
    %820 = vmatprep.subr.mxu0 0.0
    %821 = vmatpush1.msra.mxu0 0.0
    %822 = vmatprep.subr.mxu0 0.0
    %823 = vmatpush1.msra.mxu0 0.0
    %824 = vmatprep.subr.mxu0 0.0
    %825 = vmatpush1.msra.mxu0 0.0
    %826 = vmatprep.subr.mxu0 0.0
    %827 = vmatpush1.msra.mxu0 0.0
    %828 = vmatprep.subr.mxu0 0.0
    %829 = vmatpush1.msra.mxu0 0.0
    %830 = vmatprep.subr.mxu0 0.0
    %831 = vmatpush1.msra.mxu0 0.0
    %832 = vmatprep.subr.mxu0 0.0
    %833 = vmatpush1.msra.mxu0 0.0
    %834 = vmatprep.subr.mxu0 0.0
    %835 = vmatpush1.msra.mxu0 0.0
    %836 = vmatprep.subr.mxu0 0.0
    %837 = vmatpush1.msra.mxu0 0.0
    %838 = vmatprep.subr.mxu0 0.0
    %839 = vmatpush1.msra.mxu0 0.0
    %840 = vmatprep.subr.mxu0 0.0
    %841 = vmatpush1.msra.mxu0 0.0
    %842 = vmatprep.subr.mxu0 0.0
    %843 = vmatpush1.msra.mxu0 0.0
    %844 = vmatprep.mubr.f32.mxu0 0.0
    %845 = vmatmul.mubr.f32.gmra.mrb[0].mxu0 %v766
    %v846 = vpop.f32.mrb[0].mxu0
    %v847 = vadd.f32 %v778, %v846
    %v848 = vpop.f32.mrb[0].mxu0
    %849 = vmatprep.mubr.f32.mxu0 0.0
    %850 = vmatmul.mubr.f32.gmra.mrb[0].mxu0 %v767
    %v851 = vpop.f32.mrb[0].mxu0
    %v852 = vadd.f32 %v778, %v851
    %v853 = vpop.f32.mrb[0].mxu0
    %854 = vmatprep.mubr.f32.mxu0 0.0
    %855 = vmatmul.mubr.f32.gmra.mrb[0].mxu0 %v768
    %v856 = vpop.f32.mrb[0].mxu0
    %v857 = vadd.f32 %v778, %v856
    %v858 = vpop.f32.mrb[0].mxu0
    %859 = vmatprep.mubr.f32.mxu0 0.0
    %860 = vmatmul.mubr.f32.gmra.mrb[0].mxu0 %v769
    %v861 = vpop.f32.mrb[0].mxu0
    %v862 = vadd.f32 %v778, %v861
    %v863 = vpop.f32.mrb[0].mxu0
    %864 = vmatprep.mubr.f32.mxu0 0.0
    %865 = vmatmul.mubr.f32.gmra.mrb[0].mxu0 %v770
    %v866 = vpop.f32.mrb[0].mxu0
    %v867 = vadd.f32 %v778, %v866
    %v868 = vpop.f32.mrb[0].mxu0
    %869 = vmatprep.mubr.f32.mxu0 0.0
    %870 = vmatmul.mubr.f32.gmra.mrb[0].mxu0 %v771
    %v871 = vpop.f32.mrb[0].mxu0
    %v872 = vadd.f32 %v778, %v871
    %v873 = vpop.f32.mrb[0].mxu0
    %874 = vmatprep.mubr.f32.mxu0 0.0
    %875 = vmatmul.mubr.f32.gmra.mrb[0].mxu0 %v772
    %v876 = vpop.f32.mrb[0].mxu0
    %v877 = vadd.f32 %v778, %v876
    %v878 = vpop.f32.mrb[0].mxu0
    %879 = vmatprep.mubr.f32.mxu0 0.0
    %880 = vmatmul.mubr.f32.gmra.mrb[0].mxu0 %v773
    %v881 = vpop.f32.mrb[0].mxu0
    %v882 = vpop.f32.mrb[0].mxu0
    %883 = vdwg.mxu0
    %vm884 = vcmp.ge.f32.partialorder %v847, 0.0
    %vm885 = vcmp.ge.f32.partialorder %v852, 0.0
    %vm886 = vcmp.ge.f32.partialorder %v857, 0.0
    %vm887 = vcmp.ge.f32.partialorder %v862, 0.0
    %vm888 = vcmp.ge.f32.partialorder %v867, 0.0
    %vm889 = vcmp.ge.f32.partialorder %v872, 0.0
    %vm890 = vcmp.ge.f32.partialorder %v877, 0.0
    %v891 = vmul.f32 %v847, 0.1
    %v892 = vmul.f32 %v852, 0.1
    %v893 = vmul.f32 %v857, 0.1
    %v894 = vmul.f32 %v862, 0.1
    %v895 = vmul.f32 %v867, 0.1
    %v896 = vmul.f32 %v872, 0.1
    %v897 = vmul.f32 %v877, 0.1
    %v898 = vsel %vm884, %v847, %v891
    %v899 = vsel %vm885, %v852, %v892
    %v900 = vsel %vm886, %v857, %v893
    %v901 = vsel %vm887, %v862, %v894
    %v902 = vsel %vm888, %v867, %v895
    %v903 = vsel %vm889, %v872, %v896
    %v904 = vsel %vm890, %v877, %v897
    %906 = vrot.lane.b32.xlu0 %v899, 32
    %v907 = vpop.permute.xlu0 %906
    %910 = vrot.lane.b32.xlu0 %v900, 64
    %v911 = vpop.permute.xlu0 %910
    %914 = vrot.lane.b32.xlu0 %v901, 96
    %v915 = vpop.permute.xlu0 %914
    %918 = vrot.lane.b32.xlu0 %v903, 32
    %v919 = vpop.permute.xlu0 %918
    %922 = vrot.lane.b32.xlu0 %v904, 64
    %v923 = vpop.permute.xlu0 %922
    %v925 = vsel %vm543, %v898, %v907
    %v926 = vsel %vm552, %v925, %v911
    %v927 = vsel %vm567, %v926, %v915
    %v928 = vsel %vm543, %v902, %v919
    %v929 = vsel %vm552, %v928, %v923
    %v930 = vld [vmem:[%s7] sm:$0xff]
    %v931 = vld [vmem:[%s7 + $0x8] sm:$0xff]
    %v932 = vld [vmem:[%s7 + $0x10] sm:$0xff]
    %v933 = vld [vmem:[%s7 + $0x18] sm:$0xff]
    %v934 = vld [vmem:[%s7 + $0x20] sm:$0xff]
    %v935 = vld [vmem:[%s7 + $0x28] sm:$0xff]
    %v936 = vld [vmem:[%s7 + $0x30] sm:$0xff]
    %v937 = vld [vmem:[%s7 + $0x38] sm:$0xff]
    %v938 = vld [vmem:[%s7 + $0x40] sm:$0xff]
    %v939 = vld [vmem:[%s7 + $0x48] sm:$0xff]
    %v940 = vld [vmem:[%s7 + $0x50] sm:$0xff]
    %v941 = vld [vmem:[%s7 + $0x58] sm:$0xff]
    %v942 = vld [vmem:[%s7 + $0x60] sm:$0xff]
    %v943 = vld [vmem:[%s7 + $0x68] sm:$0xff]
    %v944 = vld [vmem:[%s7 + $0x70] sm:$0xff]
    %v945 = vld [vmem:[%s7 + $0x78] sm:$0xff]
    %v946 = vld [vmem:[%s7 + $0x80] sm:$0xff]
    %v947 = vld [vmem:[%s7 + $0x88] sm:$0xff]
    %v948 = vld [vmem:[%s7 + $0x90] sm:$0xff]
    %v949 = vld [vmem:[%s7 + $0x98] sm:$0xff]
    %v950 = vld [vmem:[%s7 + $0xa0] sm:$0xff]
    %v951 = vld [vmem:[%s7 + $0xa8] sm:$0xff]
    %v952 = vld [vmem:[%s7 + $0xb0] sm:$0xff]
    %v953 = vld [vmem:[%s7 + $0xb8] sm:$0xff]
    %v954 = vld [vmem:[%s7 + $0xc0] sm:$0xff]
    %v955 = vld [vmem:[%s7 + $0xc8] sm:$0xff]
    %v956 = vld [vmem:[%s7 + $0xd0] sm:$0xff]
    %v957 = vld [vmem:[%s7 + $0xd8] sm:$0xff]
    %v958 = vld [vmem:[%s8] sm:$0x1]
    %v960 = vlaneseq
    %v961 = vshrl.u32 %v960, 7
    %v962 = vsub.s32 0, %v961
    %v963 = vrot.slane %v958, %v962
    %v966 = vsel %vm567, %v929, 0
    %968 = vmatprep.subr.mxu0 0.0
    %969 = vmatpush1.msra.mxu0 %v930
    %970 = vmatprep.subr.mxu0 0.0
    %971 = vmatpush1.msra.mxu0 %v931
    %972 = vmatprep.subr.mxu0 0.0
    %973 = vmatpush1.msra.mxu0 %v932
    %974 = vmatprep.subr.mxu0 0.0
    %975 = vmatpush1.msra.mxu0 %v933
    %976 = vmatprep.subr.mxu0 0.0
    %977 = vmatpush1.msra.mxu0 %v934
    %978 = vmatprep.subr.mxu0 0.0
    %979 = vmatpush1.msra.mxu0 %v935
    %980 = vmatprep.subr.mxu0 0.0
    %981 = vmatpush1.msra.mxu0 %v936
    %982 = vmatprep.subr.mxu0 0.0
    %983 = vmatpush1.msra.mxu0 %v937
    %984 = vmatprep.subr.mxu0 0.0
    %985 = vmatpush1.msra.mxu0 %v938
    %986 = vmatprep.subr.mxu0 0.0
    %987 = vmatpush1.msra.mxu0 %v939
    %988 = vmatprep.subr.mxu0 0.0
    %989 = vmatpush1.msra.mxu0 %v940
    %990 = vmatprep.subr.mxu0 0.0
    %991 = vmatpush1.msra.mxu0 %v941
    %992 = vmatprep.subr.mxu0 0.0
    %993 = vmatpush1.msra.mxu0 %v942
    %994 = vmatprep.subr.mxu0 0.0
    %995 = vmatpush1.msra.mxu0 %v943
    %996 = vmatprep.subr.mxu0 0.0
    %997 = vmatpush1.msra.mxu0 %v944
    %998 = vmatprep.subr.mxu0 0.0
    %999 = vmatpush1.msra.mxu0 %v945
    %1000 = vmatprep.subr.mxu0 0.0
    %1001 = vmatpush1.msra.mxu0 %v946
    %1002 = vmatprep.subr.mxu0 0.0
    %1003 = vmatpush1.msra.mxu0 %v947
    %1004 = vmatprep.subr.mxu0 0.0
    %1005 = vmatpush1.msra.mxu0 %v948
    %1006 = vmatprep.subr.mxu0 0.0
    %1007 = vmatpush1.msra.mxu0 %v949
    %1008 = vmatprep.subr.mxu0 0.0
    %1009 = vmatpush1.msra.mxu0 %v950
    %1010 = vmatprep.subr.mxu0 0.0
    %1011 = vmatpush1.msra.mxu0 %v951
    %1012 = vmatprep.subr.mxu0 0.0
    %1013 = vmatpush1.msra.mxu0 %v952
    %1014 = vmatprep.subr.mxu0 0.0
    %1015 = vmatpush1.msra.mxu0 %v953
    %1016 = vmatprep.subr.mxu0 0.0
    %1017 = vmatpush1.msra.mxu0 %v954
    %1018 = vmatprep.subr.mxu0 0.0
    %1019 = vmatpush1.msra.mxu0 %v955
    %1020 = vmatprep.subr.mxu0 0.0
    %1021 = vmatpush1.msra.mxu0 %v956
    %1022 = vmatprep.subr.mxu0 0.0
    %1023 = vmatpush1.msra.mxu0 %v957
    %1024 = vmatprep.subr.mxu0 0.0
    %1025 = vmatpush1.msra.mxu0 0.0
    %1026 = vmatprep.subr.mxu0 0.0
    %1027 = vmatpush1.msra.mxu0 0.0
    %1028 = vmatprep.subr.mxu0 0.0
    %1029 = vmatpush1.msra.mxu0 0.0
    %1030 = vmatprep.subr.mxu0 0.0
    %1031 = vmatpush1.msra.mxu0 0.0
    %1032 = vmatprep.mubr.f32.mxu0 %v966
    %1033 = vmatmul.mubr.f32.gmra.mrb[0].mxu0 %v927
    %v1034 = vpop.f32.mrb[0].mxu0
    %v1035 = vadd.f32 %v963, %v1034
    %v1036 = vpop.f32.mrb[0].mxu0
    %1037 = vdwg.mxu0
    %v1038 = vsub.f32 0.0, %v1035
    %v1039 = vmul.f32 %v1038, 1.442695
    %v1040 = vpow.pop %v1039
    %v1041 = vadd.f32 %v1040, 1.0
    %v1042 = vrcp.pop %v1041
    %v1043 = vld [vmem:[%s9] sm:$0xff]
    %v1044 = vld [vmem:[%s9 + $0x8] sm:$0xff]
    %v1045 = vld [vmem:[%s9 + $0x10] sm:$0xff]
    %v1046 = vld [vmem:[%s9 + $0x18] sm:$0xff]
    %v1047 = vld [vmem:[%s9 + $0x20] sm:$0xff]
    %v1048 = vld [vmem:[%s9 + $0x28] sm:$0xff]
    %v1049 = vld [vmem:[%s9 + $0x30] sm:$0xff]
    %v1050 = vld [vmem:[%s9 + $0x38] sm:$0xff]
    %v1051 = vld [vmem:[%s9 + $0x40] sm:$0xff]
    %v1052 = vld [vmem:[%s9 + $0x48] sm:$0xff]
    %v1053 = vld [vmem:[%s9 + $0x50] sm:$0xff]
    %v1054 = vld [vmem:[%s9 + $0x58] sm:$0xff]
    %v1055 = vld [vmem:[%s9 + $0x60] sm:$0xff]
    %v1056 = vld [vmem:[%s9 + $0x68] sm:$0xff]
    %v1057 = vld [vmem:[%s10] sm:$0x1]
    %v1059 = vlaneseq
    %v1060 = vshrl.u32 %v1059, 7
    %v1061 = vsub.s32 0, %v1060
    %v1062 = vrot.slane %v1057, %v1061
    %vm1064 = vcmask 916480
    %v1066 = vsel %vm1064, %v1042, 0
    %1068 = vmatprep.subr.mxu0 0.0
    %1069 = vmatpush1.msra.mxu0 %v1043
    %1070 = vmatprep.subr.mxu0 0.0
    %1071 = vmatpush1.msra.mxu0 %v1044
    %1072 = vmatprep.subr.mxu0 0.0
    %1073 = vmatpush1.msra.mxu0 %v1045
    %1074 = vmatprep.subr.mxu0 0.0
    %1075 = vmatpush1.msra.mxu0 %v1046
    %1076 = vmatprep.subr.mxu0 0.0
    %1077 = vmatpush1.msra.mxu0 %v1047
    %1078 = vmatprep.subr.mxu0 0.0
    %1079 = vmatpush1.msra.mxu0 %v1048
    %1080 = vmatprep.subr.mxu0 0.0
    %1081 = vmatpush1.msra.mxu0 %v1049
    %1082 = vmatprep.subr.mxu0 0.0
    %1083 = vmatpush1.msra.mxu0 %v1050
    %1084 = vmatprep.subr.mxu0 0.0
    %1085 = vmatpush1.msra.mxu0 %v1051
    %1086 = vmatprep.subr.mxu0 0.0
    %1087 = vmatpush1.msra.mxu0 %v1052
    %1088 = vmatprep.subr.mxu0 0.0
    %1089 = vmatpush1.msra.mxu0 %v1053
    %1090 = vmatprep.subr.mxu0 0.0
    %1091 = vmatpush1.msra.mxu0 %v1054
    %1092 = vmatprep.subr.mxu0 0.0
    %1093 = vmatpush1.msra.mxu0 %v1055
    %1094 = vmatprep.subr.mxu0 0.0
    %1095 = vmatpush1.msra.mxu0 %v1056
    %1096 = vmatprep.subr.mxu0 0.0
    %1097 = vmatpush1.msra.mxu0 0.0
    %1098 = vmatprep.subr.mxu0 0.0
    %1099 = vmatpush1.msra.mxu0 0.0
    %1100 = vmatprep.subr.mxu0 0.0
    %1101 = vmatpush1.msra.mxu0 0.0
    %1102 = vmatprep.subr.mxu0 0.0
    %1103 = vmatpush1.msra.mxu0 0.0
    %1104 = vmatprep.subr.mxu0 0.0
    %1105 = vmatpush1.msra.mxu0 0.0
    %1106 = vmatprep.subr.mxu0 0.0
    %1107 = vmatpush1.msra.mxu0 0.0
    %1108 = vmatprep.subr.mxu0 0.0
    %1109 = vmatpush1.msra.mxu0 0.0
    %1110 = vmatprep.subr.mxu0 0.0
    %1111 = vmatpush1.msra.mxu0 0.0
    %1112 = vmatprep.subr.mxu0 0.0
    %1113 = vmatpush1.msra.mxu0 0.0
    %1114 = vmatprep.subr.mxu0 0.0
    %1115 = vmatpush1.msra.mxu0 0.0
    %1116 = vmatprep.subr.mxu0 0.0
    %1117 = vmatpush1.msra.mxu0 0.0
    %1118 = vmatprep.subr.mxu0 0.0
    %1119 = vmatpush1.msra.mxu0 0.0
    %1120 = vmatprep.subr.mxu0 0.0
    %1121 = vmatpush1.msra.mxu0 0.0
    %1122 = vmatprep.subr.mxu0 0.0
    %1123 = vmatpush1.msra.mxu0 0.0
    %1124 = vmatprep.subr.mxu0 0.0
    %1125 = vmatpush1.msra.mxu0 0.0
    %1126 = vmatprep.subr.mxu0 0.0
    %1127 = vmatpush1.msra.mxu0 0.0
    %1128 = vmatprep.subr.mxu0 0.0
    %1129 = vmatpush1.msra.mxu0 0.0
    %1130 = vmatprep.subr.mxu0 0.0
    %1131 = vmatpush1.msra.mxu0 0.0
    %1132 = vmatprep.mubr.f32.mxu0 0.0
    %1133 = vmatmul.mubr.f32.gmra.mrb[0].mxu0 %v1066
    %v1134 = vpop.f32.mrb[0].mxu0
    %v1135 = vadd.f32 %v1062, %v1134
    %v1136 = vpop.f32.mrb[0].mxu0
    %1137 = vdwg.mxu0
    %v1138 = vld [vmem:[%s11] sm:$0xff]
    %v1139 = vld [vmem:[%s12] sm:$0x1]
    %v1141 = vlaneseq
    %v1142 = vshrl.u32 %v1141, 7
    %v1143 = vsub.s32 0, %v1142
    %v1144 = vrot.slane %v1139, %v1143
    %v1147 = vsel %vm184, %v1135, 0
    %1149 = vmatprep.subr.mxu0 0.0
    %1150 = vmatpush1.msra.mxu0 %v1138
    %1151 = vmatprep.subr.mxu0 0.0
    %1152 = vmatpush1.msra.mxu0 0.0
    %1153 = vmatprep.subr.mxu0 0.0
    %1154 = vmatpush1.msra.mxu0 0.0
    %1155 = vmatprep.subr.mxu0 0.0
    %1156 = vmatpush1.msra.mxu0 0.0
    %1157 = vmatprep.subr.mxu0 0.0
    %1158 = vmatpush1.msra.mxu0 0.0
    %1159 = vmatprep.subr.mxu0 0.0
    %1160 = vmatpush1.msra.mxu0 0.0
    %1161 = vmatprep.subr.mxu0 0.0
    %1162 = vmatpush1.msra.mxu0 0.0
    %1163 = vmatprep.subr.mxu0 0.0
    %1164 = vmatpush1.msra.mxu0 0.0
    %1165 = vmatprep.subr.mxu0 0.0
    %1166 = vmatpush1.msra.mxu0 0.0
    %1167 = vmatprep.subr.mxu0 0.0
    %1168 = vmatpush1.msra.mxu0 0.0
    %1169 = vmatprep.subr.mxu0 0.0
    %1170 = vmatpush1.msra.mxu0 0.0
    %1171 = vmatprep.subr.mxu0 0.0
    %1172 = vmatpush1.msra.mxu0 0.0
    %1173 = vmatprep.subr.mxu0 0.0
    %1174 = vmatpush1.msra.mxu0 0.0
    %1175 = vmatprep.subr.mxu0 0.0
    %1176 = vmatpush1.msra.mxu0 0.0
    %1177 = vmatprep.subr.mxu0 0.0
    %1178 = vmatpush1.msra.mxu0 0.0
    %1179 = vmatprep.subr.mxu0 0.0
    %1180 = vmatpush1.msra.mxu0 0.0
    %1181 = vmatprep.subr.mxu0 0.0
    %1182 = vmatpush1.msra.mxu0 0.0
    %1183 = vmatprep.subr.mxu0 0.0
    %1184 = vmatpush1.msra.mxu0 0.0
    %1185 = vmatprep.subr.mxu0 0.0
    %1186 = vmatpush1.msra.mxu0 0.0
    %1187 = vmatprep.subr.mxu0 0.0
    %1188 = vmatpush1.msra.mxu0 0.0
    %1189 = vmatprep.subr.mxu0 0.0
    %1190 = vmatpush1.msra.mxu0 0.0
    %1191 = vmatprep.subr.mxu0 0.0
    %1192 = vmatpush1.msra.mxu0 0.0
    %1193 = vmatprep.subr.mxu0 0.0
    %1194 = vmatpush1.msra.mxu0 0.0
    %1195 = vmatprep.subr.mxu0 0.0
    %1196 = vmatpush1.msra.mxu0 0.0
    %1197 = vmatprep.subr.mxu0 0.0
    %1198 = vmatpush1.msra.mxu0 0.0
    %1199 = vmatprep.subr.mxu0 0.0
    %1200 = vmatpush1.msra.mxu0 0.0
    %1201 = vmatprep.subr.mxu0 0.0
    %1202 = vmatpush1.msra.mxu0 0.0
    %1203 = vmatprep.subr.mxu0 0.0
    %1204 = vmatpush1.msra.mxu0 0.0
    %1205 = vmatprep.subr.mxu0 0.0
    %1206 = vmatpush1.msra.mxu0 0.0
    %1207 = vmatprep.subr.mxu0 0.0
    %1208 = vmatpush1.msra.mxu0 0.0
    %1209 = vmatprep.subr.mxu0 0.0
    %1210 = vmatpush1.msra.mxu0 0.0
    %1211 = vmatprep.subr.mxu0 0.0
    %1212 = vmatpush1.msra.mxu0 0.0
    %1213 = vmatprep.mubr.f32.mxu0 0.0
    %1214 = vmatmul.mubr.f32.gmra.mrb[0].mxu0 %v1147
    %v1215 = vpop.f32.mrb[0].mxu0
    %v1216 = vadd.f32 %v1144, %v1215
    %v1217 = vpop.f32.mrb[0].mxu0
    %1218 = vdwg.mxu0
    %v1219 = vmax.f32 %v1216, 0.0
    %v1220 = vld [vmem:[%s13] sm:$0xf]
    %v1221 = vld [vmem:[%s14] sm:$0x1]
    %v1223 = vlaneseq
    %v1224 = vshrl.u32 %v1223, 7
    %v1225 = vsub.s32 0, %v1224
    %v1226 = vrot.slane %v1221, %v1225
    %vm1228 = vcmask 31744
    %v1230 = vsel %vm1228, %v1219, 0
    %vm1232 = vcmask 1043456
    %v1234 = vsel %vm1232, %v1220, 0
    %1236 = vmatprep.subr.mxu0 0.0
    %1237 = vmatpush1.msra.mxu0 %v1234
    %1238 = vmatprep.subr.mxu0 0.0
    %1239 = vmatpush1.msra.mxu0 0.0
    %1240 = vmatprep.subr.mxu0 0.0
    %1241 = vmatpush1.msra.mxu0 0.0
    %1242 = vmatprep.subr.mxu0 0.0
    %1243 = vmatpush1.msra.mxu0 0.0
    %1244 = vmatprep.subr.mxu0 0.0
    %1245 = vmatpush1.msra.mxu0 0.0
    %1246 = vmatprep.subr.mxu0 0.0
    %1247 = vmatpush1.msra.mxu0 0.0
    %1248 = vmatprep.subr.mxu0 0.0
    %1249 = vmatpush1.msra.mxu0 0.0
    %1250 = vmatprep.subr.mxu0 0.0
    %1251 = vmatpush1.msra.mxu0 0.0
    %1252 = vmatprep.subr.mxu0 0.0
    %1253 = vmatpush1.msra.mxu0 0.0
    %1254 = vmatprep.subr.mxu0 0.0
    %1255 = vmatpush1.msra.mxu0 0.0
    %1256 = vmatprep.subr.mxu0 0.0
    %1257 = vmatpush1.msra.mxu0 0.0
    %1258 = vmatprep.subr.mxu0 0.0
    %1259 = vmatpush1.msra.mxu0 0.0
    %1260 = vmatprep.subr.mxu0 0.0
    %1261 = vmatpush1.msra.mxu0 0.0
    %1262 = vmatprep.subr.mxu0 0.0
    %1263 = vmatpush1.msra.mxu0 0.0
    %1264 = vmatprep.subr.mxu0 0.0
    %1265 = vmatpush1.msra.mxu0 0.0
    %1266 = vmatprep.subr.mxu0 0.0
    %1267 = vmatpush1.msra.mxu0 0.0
    %1268 = vmatprep.subr.mxu0 0.0
    %1269 = vmatpush1.msra.mxu0 0.0
    %1270 = vmatprep.subr.mxu0 0.0
    %1271 = vmatpush1.msra.mxu0 0.0
    %1272 = vmatprep.subr.mxu0 0.0
    %1273 = vmatpush1.msra.mxu0 0.0
    %1274 = vmatprep.subr.mxu0 0.0
    %1275 = vmatpush1.msra.mxu0 0.0
    %1276 = vmatprep.subr.mxu0 0.0
    %1277 = vmatpush1.msra.mxu0 0.0
    %1278 = vmatprep.subr.mxu0 0.0
    %1279 = vmatpush1.msra.mxu0 0.0
    %1280 = vmatprep.subr.mxu0 0.0
    %1281 = vmatpush1.msra.mxu0 0.0
    %1282 = vmatprep.subr.mxu0 0.0
    %1283 = vmatpush1.msra.mxu0 0.0
    %1284 = vmatprep.subr.mxu0 0.0
    %1285 = vmatpush1.msra.mxu0 0.0
    %1286 = vmatprep.subr.mxu0 0.0
    %1287 = vmatpush1.msra.mxu0 0.0
    %1288 = vmatprep.subr.mxu0 0.0
    %1289 = vmatpush1.msra.mxu0 0.0
    %1290 = vmatprep.subr.mxu0 0.0
    %1291 = vmatpush1.msra.mxu0 0.0
    %1292 = vmatprep.subr.mxu0 0.0
    %1293 = vmatpush1.msra.mxu0 0.0
    %1294 = vmatprep.subr.mxu0 0.0
    %1295 = vmatpush1.msra.mxu0 0.0
    %1296 = vmatprep.subr.mxu0 0.0
    %1297 = vmatpush1.msra.mxu0 0.0
    %1298 = vmatprep.subr.mxu0 0.0
    %1299 = vmatpush1.msra.mxu0 0.0
    %1300 = vmatprep.mubr.f32.mxu0 0.0
    %1301 = vmatmul.mubr.f32.gmra.mrb[0].mxu0 %v1230
    %v1302 = vpop.f32.mrb[0].mxu0
    %v1303 = vadd.f32 %v1226, %v1302
    %v1304 = vpop.f32.mrb[0].mxu0
    %1305 = vdwg.mxu0
    %1306 = vst [vmem:[#allocation2] sm:$0xff] %v1303
    // Predicated region
    $region62: #{tpu_custom_call.1} parent=1 // pred_check
      _
    $region63: #{tpu_custom_call.1} parent=1 // pred_check_branch
      %1308 = sbr.rel (0) target = $region65
    $region64: #{tpu_custom_call.1} parent=1 // pred_region
      %s1310 = ssub.s32 128, 128
      %1311 = vsyncadd [#allocation3], %s1310
      %s1313 = sshll.u32 [#allocation2], 4
      %s1314 = int_to_ptr.vmem [resolvable:$true] %s1313
      %1316 = dma.vmem_to_hbm [thread:$0]  %s1314, 128, %s15, [#allocation3]
    $region65: #{tpu_custom_call.1} parent=1 // pred_fallthru
      _
    // Predicated region
    $region66: #{tpu_custom_call.1} parent=1 // pred_check
      _
    $region67: #{tpu_custom_call.1} parent=1 // pred_check_branch
      %1318 = sbr.rel (0) target = $region69
    $region68: #{tpu_custom_call.1} parent=1 // pred_region
      %1319 = dma.done [#allocation3], 128
    $region69: #{tpu_custom_call.1} parent=1 // pred_fallthru
      _
    %1320 = vsyncpa [#allocation3], 1

</llo_original>
